<compile_context>
chip_gen: v7x
topology: tpu7x:2x2x1
jax: 0.10.0
libtpu: 0.0.40
codegen_flags: <defaults>
</compile_context>

<pallas_src>
import math
import functools

import jax
import jax.numpy as jnp
from jax.experimental import pallas as pl
from jax.experimental.pallas import tpu as pltpu


def _pick_tile(n, cap, mult):
    """Largest divisor of n that is <= cap and a multiple of `mult` (fallback: n)."""
    if n <= cap:
        return n
    for t in range(cap, 0, -1):
        if n % t == 0 and t % mult == 0:
            return t
    return n


def bert_layer_kernel(mask_ref, x_ref,
                      wq_ref, bq_ref, wk_ref, bk_ref, wv_ref, bv_ref,
                      wao_ref, bao_ref, g1_ref, be1_ref,
                      wi_ref, bi_ref, wo2_ref, bo2_ref, g2_ref, be2_ref,
                      out_ref, acc_ref, *, head_dim, eps, q_tile, i_tile):
    h = pl.program_id(1)

    @pl.when(h == 0)
    def _init():
        acc_ref[...] = jnp.zeros_like(acc_ref)

    x_f32 = x_ref[0].astype(jnp.float32)          # (S, H): residual path stays f32
    x_bf = x_f32.astype(jnp.bfloat16)             # bf16 inputs for the MXU
    mask = mask_ref[0].astype(jnp.float32)        # (1, S) additive mask

    wq = wq_ref[0]; wk = wk_ref[0]; wv = wv_ref[0]    # (H, dh) bf16
    wao = wao_ref[0]                                  # (dh, H) bf16
    bq = bq_ref[0]; bk = bk_ref[0]; bv = bv_ref[0]    # (1, dh) f32

    scale = 1.0 / math.sqrt(head_dim)
    S = x_f32.shape[0]

    # Per-head K / V over the full sequence; f32 accumulate, bf16 for attention matmuls.
    k_h = (jnp.dot(x_bf, wk, preferred_element_type=jnp.float32) + bk).astype(jnp.bfloat16)
    v_h = (jnp.dot(x_bf, wv, preferred_element_type=jnp.float32) + bv).astype(jnp.bfloat16)

    # Query-tile loop: live score block is (q_tile, S) instead of (S, S).
    for qi in range(S // q_tile):
        lo = qi * q_tile
        xq = x_bf[lo:lo + q_tile, :]
        q = (jnp.dot(xq, wq, preferred_element_type=jnp.float32) + bq) * scale    # (tq, dh)
        s = jax.lax.dot_general(q.astype(jnp.bfloat16), k_h,
                                (((1,), (1,)), ((), ())),
                                preferred_element_type=jnp.float32)               # (tq, S)
        s = s + mask
        s = s - jnp.max(s, axis=-1, keepdims=True)
        e = jnp.exp(s)
        p = e * pl.reciprocal(jnp.sum(e, axis=-1, keepdims=True), approx=True)
        ctx = jnp.dot(p.astype(jnp.bfloat16), v_h, preferred_element_type=jnp.float32)  # (tq, dh)
        # Fold the head into the attention-output projection: accumulate, no concat.
        acc_ref[lo:lo + q_tile, :] += jnp.dot(ctx.astype(jnp.bfloat16), wao,
                                              preferred_element_type=jnp.float32)

    @pl.when(h == pl.num_programs(1) - 1)
    def _finalize():
        def layer_norm(v, g, b):
            mu = jnp.mean(v, axis=-1, keepdims=True)
            var = jnp.mean((v - mu) ** 2, axis=-1, keepdims=True)
            return (v - mu) * jax.lax.rsqrt(var + eps) * g + b

        # BertSelfOutput: accumulated dense + bias + residual + LayerNorm (all f32).
        attn = layer_norm(acc_ref[...] + bao_ref[...] + x_f32, g1_ref[...], be1_ref[...])
        attn_bf = attn.astype(jnp.bfloat16)

        # BertIntermediate + BertOutput, tiled over the intermediate dimension so the
        # live GELU block is (S, i_tile); second matmul accumulated in f32.
        I = wi_ref.shape[1]
        out_acc = jnp.zeros_like(x_f32)
        for ti in range(I // i_tile):
            ilo = ti * i_tile
            mid = jnp.dot(attn_bf, wi_ref[:, ilo:ilo + i_tile],
                          preferred_element_type=jnp.float32) + bi_ref[:, ilo:ilo + i_tile]
            # Exact erf GELU to match the PyTorch module (erf goes to the EUP port).
            mid = mid * 0.5 * (1.0 + jax.lax.erf(mid * (1.0 / math.sqrt(2.0))))
            out_acc = out_acc + jnp.dot(mid.astype(jnp.bfloat16),
                                        wo2_ref[ilo:ilo + i_tile, :],
                                        preferred_element_type=jnp.float32)

        out = layer_norm(out_acc + bo2_ref[...] + attn, g2_ref[...], be2_ref[...])
        out_ref[0] = out.astype(out_ref.dtype)


def bert_layer(x, mask, params, *, num_heads, eps=1e-12):
    B, S, H = x.shape
    I = params["wi"].shape[1]
    assert H % num_heads == 0
    dh = H // num_heads
    q_tile = _pick_tile(S, 256, 8)      # sublane-axis tile for queries
    i_tile = _pick_tile(I, 512, 128)    # lane-axis tile for the FFN intermediate

    f32, bf16 = jnp.float32, jnp.bfloat16

    # Pre-split weights per head on a *leading* axis so the kernel never lane-slices.
    def heads_out(w):   # (H, H) -> (NH, H, dh): output columns of head h
        return w.reshape(H, num_heads, dh).transpose(1, 0, 2).astype(bf16)

    def heads_in(w):    # (H, H) -> (NH, dh, H): input rows of head h
        return w.reshape(num_heads, dh, H).astype(bf16)

    def heads_bias(b):  # (1, H) -> (NH, 1, dh)
        return b.reshape(num_heads, 1, dh).astype(f32)

    wq = heads_out(params["wq"]); bq = heads_bias(params["bq"])
    wk = heads_out(params["wk"]); bk = heads_bias(params["bk"])
    wv = heads_out(params["wv"]); bv = heads_bias(params["bv"])
    wao = heads_in(params["wao"])
    wi = params["wi"].astype(bf16)
    wo2 = params["wo2"].astype(bf16)
    bao = params["bao"].astype(f32); bi = params["bi"].astype(f32)
    bo2 = params["bo2"].astype(f32)
    g1 = params["g1"].astype(f32); be1 = params["be1"].astype(f32)
    g2 = params["g2"].astype(f32); be2 = params["be2"].astype(f32)

    x = x.astype(f32)
    mask3 = mask.reshape(B, 1, S).astype(f32)

    batch_idx = lambda b, h: (b, 0, 0)
    head_idx = lambda b, h: (h, 0, 0)
    fixed2 = lambda b, h: (0, 0)

    in_specs = [
        pl.BlockSpec((1, 1, S), batch_idx),                                      # mask
        pl.BlockSpec((1, S, H), batch_idx),                                      # hidden_states
        pl.BlockSpec((1, H, dh), head_idx), pl.BlockSpec((1, 1, dh), head_idx),  # wq, bq
        pl.BlockSpec((1, H, dh), head_idx), pl.BlockSpec((1, 1, dh), head_idx),  # wk, bk
        pl.BlockSpec((1, H, dh), head_idx), pl.BlockSpec((1, 1, dh), head_idx),  # wv, bv
        pl.BlockSpec((1, dh, H), head_idx),                                      # wao (per-head)
        pl.BlockSpec((1, H), fixed2),                                            # bao
        pl.BlockSpec((1, H), fixed2), pl.BlockSpec((1, H), fixed2),              # g1, be1
        pl.BlockSpec((H, I), fixed2), pl.BlockSpec((1, I), fixed2),              # wi, bi
        pl.BlockSpec((I, H), fixed2), pl.BlockSpec((1, H), fixed2),              # wo2, bo2
        pl.BlockSpec((1, H), fixed2), pl.BlockSpec((1, H), fixed2),              # g2, be2
    ]

    # Explicit VMEM budget sized from the actual (double-buffered) block footprint
    # plus live intermediates, instead of relying on the default scoped limit.
    block_bytes = (
        S * 4 + S * H * 4                         # mask + x
        + 3 * (H * dh * 2 + dh * 4)               # per-head q/k/v weights + biases
        + dh * H * 2                              # per-head attn-output weight
        + H * I * 2 + I * 4 + I * H * 2           # wi, bi, wo2
        + 7 * H * 4                               # bao, g1, be1, bo2, g2, be2
    )
    live_bytes = (2 * S * dh * 4                  # K / V
                  + 3 * q_tile * S * 4            # scores / probs
                  + 2 * S * i_tile * 4            # FFN tile
                  + 4 * S * H * 4)                # attn_out / out intermediates
    vmem_est = 2 * block_bytes + 3 * S * H * 4 + live_bytes + (4 << 20)
    vmem_limit = int(min(max(vmem_est, 32 << 20), 100 << 20))

    kernel = functools.partial(bert_layer_kernel, head_dim=dh, eps=eps,
                               q_tile=q_tile, i_tile=i_tile)

    return pl.pallas_call(
        kernel,
        out_shape=jax.ShapeDtypeStruct((B, S, H), x.dtype),   # explicit output dtype
        grid_spec=pltpu.PrefetchScalarGridSpec(
            num_scalar_prefetch=0,
            grid=(B, num_heads),
            in_specs=in_specs,
            out_specs=pl.BlockSpec((1, S, H), batch_idx),
            scratch_shapes=[pltpu.VMEM((S, H), jnp.float32)]),
        compiler_params=pltpu.CompilerParams(
            dimension_semantics=("parallel", "arbitrary"),
            vmem_limit_bytes=vmem_limit),
    )(mask3, x, wq, bq, wk, bk, wv, bv, wao, bao, g1, be1,
      wi, bi, wo2, bo2, g2, be2)


def bert_layer_ref(x, mask, params, *, num_heads, eps=1e-12):
    """Pure-JAX (f32) reference mirroring the PyTorch forward (eval mode)."""
    B, S, H = x.shape
    dh = H // num_heads

    def lin(inp, w, b):
        return inp @ w + b

    q = lin(x, params["wq"], params["bq"]).reshape(B, S, num_heads, dh).transpose(0, 2, 1, 3)
    k = lin(x, params["wk"], params["bk"]).reshape(B, S, num_heads, dh).transpose(0, 2, 1, 3)
    v = lin(x, params["wv"], params["bv"]).reshape(B, S, num_heads, dh).transpose(0, 2, 1, 3)
    s = jnp.einsum("bhqd,bhkd->bhqk", q, k) / math.sqrt(dh)
    s = s + mask[:, None, None, :]
    p = jax.nn.softmax(s, axis=-1)
    ctx = jnp.einsum("bhqk,bhkd->bhqd", p, v).transpose(0, 2, 1, 3).reshape(B, S, H)

    def ln(inp, g, b):
        mu = jnp.mean(inp, axis=-1, keepdims=True)
        var = jnp.mean((inp - mu) ** 2, axis=-1, keepdims=True)
        return (inp - mu) / jnp.sqrt(var + eps) * g + b

    attn_out = ln(lin(ctx, params["wao"], params["bao"]) + x, params["g1"], params["be1"])
    inter = lin(attn_out, params["wi"], params["bi"])
    inter = inter * 0.5 * (1.0 + jax.lax.erf(inter / math.sqrt(2.0)))
    return ln(lin(inter, params["wo2"], params["bo2"]) + attn_out, params["g2"], params["be2"])


if __name__ == "__main__":
    # Small BERT config: hidden=32, heads=4, intermediate=64, seq=8, batch=2.
    B, S, H, NH, I = 2, 8, 32, 4, 64

    key = jax.random.PRNGKey(0)
    keys = jax.random.split(key, 16)

    def w(k, shape, scale=0.02):
        return jax.random.normal(k, shape, jnp.float32) * scale

    params = {
        "wq": w(keys[0], (H, H)), "bq": w(keys[1], (1, H)),
        "wk": w(keys[2], (H, H)), "bk": w(keys[3], (1, H)),
        "wv": w(keys[4], (H, H)), "bv": w(keys[5], (1, H)),
        "wao": w(keys[6], (H, H)), "bao": w(keys[7], (1, H)),
        "g1": jnp.ones((1, H), jnp.float32), "be1": jnp.zeros((1, H), jnp.float32),
        "wi": w(keys[8], (H, I)), "bi": w(keys[9], (1, I)),
        "wo2": w(keys[10], (I, H)), "bo2": w(keys[11], (1, H)),
        "g2": jnp.ones((1, H), jnp.float32), "be2": jnp.zeros((1, H), jnp.float32),
    }

    x = jax.random.normal(keys[12], (B, S, H), jnp.float32)
    # Additive attention mask: batch 0 fully valid, batch 1 has last 2 tokens masked.
    valid = jnp.array([[1] * S, [1] * (S - 2) + [0] * 2], jnp.float32)
    mask = (1.0 - valid) * -10000.0  # (B, S)

    out = bert_layer(x, mask, params, num_heads=NH)
    out = jax.block_until_ready(out)

    ref = bert_layer_ref(x, mask, params, num_heads=NH)
    assert out.shape == (B, S, H)
    # bf16 matmul inputs + approx reciprocal => compare with bf16-level tolerance.
    assert jnp.allclose(out, ref, atol=2e-2, rtol=2e-2), "mismatch vs pure-JAX reference"

    print("KERNEL_OK")
</pallas_src>

<mosaic_0001>
module attributes {stable_mosaic.version = 11 : i64} {
  func.func @bert_layer_kernel(%arg0: i32, %arg1: i32, %arg2: memref<1x1x8xf32, #tpu.memory_space<vmem>>, %arg3: memref<1x8x32xf32, #tpu.memory_space<vmem>>, %arg4: memref<1x32x8xbf16, #tpu.memory_space<vmem>>, %arg5: memref<1x1x8xf32, #tpu.memory_space<vmem>>, %arg6: memref<1x32x8xbf16, #tpu.memory_space<vmem>>, %arg7: memref<1x1x8xf32, #tpu.memory_space<vmem>>, %arg8: memref<1x32x8xbf16, #tpu.memory_space<vmem>>, %arg9: memref<1x1x8xf32, #tpu.memory_space<vmem>>, %arg10: memref<1x8x32xbf16, #tpu.memory_space<vmem>>, %arg11: memref<1x32xf32, #tpu.memory_space<vmem>>, %arg12: memref<1x32xf32, #tpu.memory_space<vmem>>, %arg13: memref<1x32xf32, #tpu.memory_space<vmem>>, %arg14: memref<32x64xbf16, #tpu.memory_space<vmem>>, %arg15: memref<1x64xf32, #tpu.memory_space<vmem>>, %arg16: memref<64x32xbf16, #tpu.memory_space<vmem>>, %arg17: memref<1x32xf32, #tpu.memory_space<vmem>>, %arg18: memref<1x32xf32, #tpu.memory_space<vmem>>, %arg19: memref<1x32xf32, #tpu.memory_space<vmem>>, %arg20: memref<1x8x32xf32, #tpu.memory_space<vmem>>, %arg21: memref<8x32xf32, #tpu.memory_space<vmem>>) attributes {dimension_semantics = [#tpu.dimension_semantics<parallel>, #tpu.dimension_semantics<arbitrary>], iteration_bounds = array<i64: 2, 4>, scalar_prefetch = 0 : i64, scratch_operands = 1 : i64, tpu.core_type = #tpu.core_type<tc>, window_params = [{transform_indices = @transform_0, window_bounds = array<i64: 1, 1, 8>}, {transform_indices = @transform_1, window_bounds = array<i64: 1, 8, 32>}, {transform_indices = @transform_2, window_bounds = array<i64: 1, 32, 8>}, {transform_indices = @transform_3, window_bounds = array<i64: 1, 1, 8>}, {transform_indices = @transform_4, window_bounds = array<i64: 1, 32, 8>}, {transform_indices = @transform_5, window_bounds = array<i64: 1, 1, 8>}, {transform_indices = @transform_6, window_bounds = array<i64: 1, 32, 8>}, {transform_indices = @transform_7, window_bounds = array<i64: 1, 1, 8>}, {transform_indices = @transform_8, window_bounds = array<i64: 1, 8, 32>}, {pipeline_mode = #tpu.pipeline_mode<synchronous>, transform_indices = @transform_9, window_bounds = array<i64: 1, 32>}, {pipeline_mode = #tpu.pipeline_mode<synchronous>, transform_indices = @transform_10, window_bounds = array<i64: 1, 32>}, {pipeline_mode = #tpu.pipeline_mode<synchronous>, transform_indices = @transform_11, window_bounds = array<i64: 1, 32>}, {pipeline_mode = #tpu.pipeline_mode<synchronous>, transform_indices = @transform_12, window_bounds = array<i64: 32, 64>}, {pipeline_mode = #tpu.pipeline_mode<synchronous>, transform_indices = @transform_13, window_bounds = array<i64: 1, 64>}, {pipeline_mode = #tpu.pipeline_mode<synchronous>, transform_indices = @transform_14, window_bounds = array<i64: 64, 32>}, {pipeline_mode = #tpu.pipeline_mode<synchronous>, transform_indices = @transform_15, window_bounds = array<i64: 1, 32>}, {pipeline_mode = #tpu.pipeline_mode<synchronous>, transform_indices = @transform_16, window_bounds = array<i64: 1, 32>}, {pipeline_mode = #tpu.pipeline_mode<synchronous>, transform_indices = @transform_17, window_bounds = array<i64: 1, 32>}, {transform_indices = @transform_18, window_bounds = array<i64: 1, 8, 32>}]} {
    %c0_i32 = arith.constant 0 : i32
    %0 = arith.cmpi eq, %arg1, %c0_i32 : i32
    %1 = arith.extui %0 : i1 to i32
    %c0_i32_0 = arith.constant 0 : i32
    %2 = arith.cmpi ne, %1, %c0_i32_0 : i32
    scf.if %2 {
      %cst_40 = arith.constant 0.000000e+00 : f32
      %59 = vector.broadcast %cst_40 : f32 to vector<8x32xf32>
      %c0_41 = arith.constant 0 : index
      %c0_42 = arith.constant 0 : index
      %60 = vector.load %arg21[%c0_41, %c0_42] : memref<8x32xf32, #tpu.memory_space<vmem>>, vector<8x32xf32>
      tpu.vector_store %arg21[%c0_41, %c0_42], %59 {strides = array<i32>} : memref<8x32xf32, #tpu.memory_space<vmem>>, vector<8x32xf32>,
    } else {
    }
    %c0 = arith.constant 0 : index
    %c0_1 = arith.constant 0 : index
    %c0_2 = arith.constant 0 : index
    %3 = vector.load %arg3[%c0, %c0_1, %c0_2] : memref<1x8x32xf32, #tpu.memory_space<vmem>>, vector<1x8x32xf32>
    %4 = vector.shape_cast %3 : vector<1x8x32xf32> to vector<8x32xf32>
    %5 = arith.truncf %4 : vector<8x32xf32> to vector<8x32xbf16>
    %c0_3 = arith.constant 0 : index
    %c0_4 = arith.constant 0 : index
    %c0_5 = arith.constant 0 : index
    %6 = vector.load %arg2[%c0_3, %c0_4, %c0_5] : memref<1x1x8xf32, #tpu.memory_space<vmem>>, vector<1x1x8xf32>
    %7 = vector.shape_cast %6 : vector<1x1x8xf32> to vector<1x8xf32>
    %c0_6 = arith.constant 0 : index
    %c0_7 = arith.constant 0 : index
    %c0_8 = arith.constant 0 : index
    %8 = vector.load %arg4[%c0_6, %c0_7, %c0_8] : memref<1x32x8xbf16, #tpu.memory_space<vmem>>, vector<1x32x8xbf16>
    %9 = vector.shape_cast %8 : vector<1x32x8xbf16> to vector<32x8xbf16>
    %c0_9 = arith.constant 0 : index
    %c0_10 = arith.constant 0 : index
    %c0_11 = arith.constant 0 : index
    %10 = vector.load %arg6[%c0_9, %c0_10, %c0_11] : memref<1x32x8xbf16, #tpu.memory_space<vmem>>, vector<1x32x8xbf16>
    %11 = vector.shape_cast %10 : vector<1x32x8xbf16> to vector<32x8xbf16>
    %c0_12 = arith.constant 0 : index
    %c0_13 = arith.constant 0 : index
    %c0_14 = arith.constant 0 : index
    %12 = vector.load %arg8[%c0_12, %c0_13, %c0_14] : memref<1x32x8xbf16, #tpu.memory_space<vmem>>, vector<1x32x8xbf16>
    %13 = vector.shape_cast %12 : vector<1x32x8xbf16> to vector<32x8xbf16>
    %c0_15 = arith.constant 0 : index
    %c0_16 = arith.constant 0 : index
    %c0_17 = arith.constant 0 : index
    %14 = vector.load %arg10[%c0_15, %c0_16, %c0_17] : memref<1x8x32xbf16, #tpu.memory_space<vmem>>, vector<1x8x32xbf16>
    %15 = vector.shape_cast %14 : vector<1x8x32xbf16> to vector<8x32xbf16>
    %c0_18 = arith.constant 0 : index
    %c0_19 = arith.constant 0 : index
    %c0_20 = arith.constant 0 : index
    %16 = vector.load %arg5[%c0_18, %c0_19, %c0_20] : memref<1x1x8xf32, #tpu.memory_space<vmem>>, vector<1x1x8xf32>
    %17 = vector.shape_cast %16 : vector<1x1x8xf32> to vector<1x8xf32>
    %c0_21 = arith.constant 0 : index
    %c0_22 = arith.constant 0 : index
    %c0_23 = arith.constant 0 : index
    %18 = vector.load %arg7[%c0_21, %c0_22, %c0_23] : memref<1x1x8xf32, #tpu.memory_space<vmem>>, vector<1x1x8xf32>
    %19 = vector.shape_cast %18 : vector<1x1x8xf32> to vector<1x8xf32>
    %c0_24 = arith.constant 0 : index
    %c0_25 = arith.constant 0 : index
    %c0_26 = arith.constant 0 : index
    %20 = vector.load %arg9[%c0_24, %c0_25, %c0_26] : memref<1x1x8xf32, #tpu.memory_space<vmem>>, vector<1x1x8xf32>
    %21 = vector.shape_cast %20 : vector<1x1x8xf32> to vector<1x8xf32>
    %cst = arith.constant dense<0.000000e+00> : vector<8x8xf32>
    %22 = tpu.matmul %5, %11, %cst {dimension_numbers = #tpu.dot_dimension_numbers<[1], [0], [0], [1], [0, 0, 1, 1], [], []>} : vector<8x32xbf16>, vector<32x8xbf16>, vector<8x8xf32> -> vector<8x8xf32>
    %23 = vector.broadcast %19 : vector<1x8xf32> to vector<8x8xf32>
    %24 = arith.addf %22, %23 : vector<8x8xf32>
    %25 = arith.truncf %24 : vector<8x8xf32> to vector<8x8xbf16>
    %cst_27 = arith.constant dense<0.000000e+00> : vector<8x8xf32>
    %26 = tpu.matmul %5, %13, %cst_27 {dimension_numbers = #tpu.dot_dimension_numbers<[1], [0], [0], [1], [0, 0, 1, 1], [], []>} : vector<8x32xbf16>, vector<32x8xbf16>, vector<8x8xf32> -> vector<8x8xf32>
    %27 = vector.broadcast %21 : vector<1x8xf32> to vector<8x8xf32>
    %28 = arith.addf %26, %27 : vector<8x8xf32>
    %29 = arith.truncf %28 : vector<8x8xf32> to vector<8x8xbf16>
    %cst_28 = arith.constant dense<0.000000e+00> : vector<8x8xf32>
    %30 = tpu.matmul %5, %9, %cst_28 {dimension_numbers = #tpu.dot_dimension_numbers<[1], [0], [0], [1], [0, 0, 1, 1], [], []>} : vector<8x32xbf16>, vector<32x8xbf16>, vector<8x8xf32> -> vector<8x8xf32>
    %31 = vector.broadcast %17 : vector<1x8xf32> to vector<8x8xf32>
    %32 = arith.addf %30, %31 : vector<8x8xf32>
    %cst_29 = arith.constant 0.353553385 : f32
    %33 = vector.broadcast %cst_29 : f32 to vector<8x8xf32>
    %34 = arith.mulf %32, %33 : vector<8x8xf32>
    %35 = arith.truncf %34 : vector<8x8xf32> to vector<8x8xbf16>
    %cst_30 = arith.constant dense<0.000000e+00> : vector<8x8xf32>
    %36 = tpu.matmul %35, %25, %cst_30 {dimension_numbers = #tpu.dot_dimension_numbers<[1], [1], [0], [0], [0, 0, 1, 0], [], []>} : vector<8x8xbf16>, vector<8x8xbf16>, vector<8x8xf32> -> vector<8x8xf32>
    %37 = vector.broadcast %7 : vector<1x8xf32> to vector<8x8xf32>
    %38 = arith.addf %36, %37 : vector<8x8xf32>
    %cst_31 = arith.constant dense<0xFF800000> : vector<8xf32>
    %39 = vector.multi_reduction <maximumf>, %38, %cst_31 [1] : vector<8x8xf32> to vector<8xf32>
    %40 = vector.shape_cast %39 : vector<8xf32> to vector<8x1xf32>
    %41 = vector.broadcast %40 : vector<8x1xf32> to vector<8x8xf32>
    %42 = arith.subf %38, %41 : vector<8x8xf32>
    %43 = math.exp %42 : vector<8x8xf32>
    %cst_32 = arith.constant dense<0.000000e+00> : vector<8xf32>
    %44 = vector.multi_reduction <add>, %43, %cst_32 [1] : vector<8x8xf32> to vector<8xf32>
    %45 = vector.shape_cast %44 : vector<8xf32> to vector<8x1xf32>
    %46 = tpu.reciprocal %45 {approx = true} : vector<8x1xf32> -> vector<8x1xf32>
    %47 = vector.broadcast %46 : vector<8x1xf32> to vector<8x8xf32>
    %48 = arith.mulf %43, %47 : vector<8x8xf32>
    %49 = arith.truncf %48 : vector<8x8xf32> to vector<8x8xbf16>
    %cst_33 = arith.constant dense<0.000000e+00> : vector<8x8xf32>
    %50 = tpu.matmul %49, %29, %cst_33 {dimension_numbers = #tpu.dot_dimension_numbers<[1], [0], [0], [1], [0, 0, 1, 1], [], []>} : vector<8x8xbf16>, vector<8x8xbf16>, vector<8x8xf32> -> vector<8x8xf32>
    %c0_34 = arith.constant 0 : index
    %c0_35 = arith.constant 0 : index
    %51 = vector.load %arg21[%c0_34, %c0_35] : memref<8x32xf32, #tpu.memory_space<vmem>>, vector<8x32xf32>
    %52 = arith.truncf %50 : vector<8x8xf32> to vector<8x8xbf16>
    %cst_36 = arith.constant dense<0.000000e+00> : vector<8x32xf32>
    %53 = tpu.matmul %52, %15, %cst_36 {dimension_numbers = #tpu.dot_dimension_numbers<[1], [0], [0], [1], [0, 0, 1, 1], [], []>} : vector<8x8xbf16>, vector<8x32xbf16>, vector<8x32xf32> -> vector<8x32xf32>
    %54 = arith.addf %51, %53 : vector<8x32xf32>
    %c0_37 = arith.constant 0 : index
    %c0_38 = arith.constant 0 : index
    %55 = vector.load %arg21[%c0_37, %c0_38] : memref<8x32xf32, #tpu.memory_space<vmem>>, vector<8x32xf32>
    tpu.vector_store %arg21[%c0_37, %c0_38], %54 {strides = array<i32>} : memref<8x32xf32, #tpu.memory_space<vmem>>, vector<8x32xf32>,
    %c3_i32 = arith.constant 3 : i32
    %56 = arith.cmpi eq, %arg1, %c3_i32 : i32
    %57 = arith.extui %56 : i1 to i32
    %c0_i32_39 = arith.constant 0 : i32
    %58 = arith.cmpi ne, %57, %c0_i32_39 : i32
    scf.if %58 {
      %c0_40 = arith.constant 0 : index
      %c0_41 = arith.constant 0 : index
      %59 = vector.load %arg21[%c0_40, %c0_41] : memref<8x32xf32, #tpu.memory_space<vmem>>, vector<8x32xf32>
      %c0_42 = arith.constant 0 : index
      %c0_43 = arith.constant 0 : index
      %60 = vector.load %arg11[%c0_42, %c0_43] : memref<1x32xf32, #tpu.memory_space<vmem>>, vector<1x32xf32>
      %61 = vector.broadcast %60 : vector<1x32xf32> to vector<8x32xf32>
      %62 = arith.addf %59, %61 : vector<8x32xf32>
      %63 = arith.addf %62, %4 : vector<8x32xf32>
      %c0_44 = arith.constant 0 : index
      %c0_45 = arith.constant 0 : index
      %64 = vector.load %arg12[%c0_44, %c0_45] : memref<1x32xf32, #tpu.memory_space<vmem>>, vector<1x32xf32>
      %c0_46 = arith.constant 0 : index
      %c0_47 = arith.constant 0 : index
      %65 = vector.load %arg13[%c0_46, %c0_47] : memref<1x32xf32, #tpu.memory_space<vmem>>, vector<1x32xf32>
      %cst_48 = arith.constant dense<0.000000e+00> : vector<8xf32>
      %66 = vector.multi_reduction <add>, %63, %cst_48 [1] : vector<8x32xf32> to vector<8xf32>
      %67 = vector.shape_cast %66 : vector<8xf32> to vector<8x1xf32>
      %cst_49 = arith.constant 3.200000e+01 : f32
      %68 = vector.broadcast %cst_49 : f32 to vector<8x1xf32>
      %69 = arith.divf %67, %68 : vector<8x1xf32>
      %70 = vector.broadcast %69 : vector<8x1xf32> to vector<8x32xf32>
      %71 = arith.subf %63, %70 : vector<8x32xf32>
      %72 = arith.mulf %71, %71 : vector<8x32xf32>
      %cst_50 = arith.constant dense<0.000000e+00> : vector<8xf32>
      %73 = vector.multi_reduction <add>, %72, %cst_50 [1] : vector<8x32xf32> to vector<8xf32>
      %74 = vector.shape_cast %73 : vector<8xf32> to vector<8x1xf32>
      %cst_51 = arith.constant 3.200000e+01 : f32
      %75 = vector.broadcast %cst_51 : f32 to vector<8x1xf32>
      %76 = arith.divf %74, %75 : vector<8x1xf32>
      %77 = vector.broadcast %69 : vector<8x1xf32> to vector<8x32xf32>
      %78 = arith.subf %63, %77 : vector<8x32xf32>
      %cst_52 = arith.constant 9.99999996E-13 : f32
      %79 = vector.broadcast %cst_52 : f32 to vector<8x1xf32>
      %80 = arith.addf %76, %79 : vector<8x1xf32>
      %81 = math.rsqrt %80 : vector<8x1xf32>
      %82 = vector.broadcast %81 : vector<8x1xf32> to vector<8x32xf32>
      %83 = arith.mulf %78, %82 : vector<8x32xf32>
      %84 = vector.broadcast %64 : vector<1x32xf32> to vector<8x32xf32>
      %85 = arith.mulf %83, %84 : vector<8x32xf32>
      %86 = vector.broadcast %65 : vector<1x32xf32> to vector<8x32xf32>
      %87 = arith.addf %85, %86 : vector<8x32xf32>
      %88 = arith.truncf %87 : vector<8x32xf32> to vector<8x32xbf16>
      %cst_53 = arith.constant 0.000000e+00 : f32
      %89 = vector.broadcast %cst_53 : f32 to vector<8x32xf32>
      %c0_54 = arith.constant 0 : index
      %c0_55 = arith.constant 0 : index
      %90 = vector.load %arg14[%c0_54, %c0_55] : memref<32x64xbf16, #tpu.memory_space<vmem>>, vector<32x64xbf16>
      %cst_56 = arith.constant dense<0.000000e+00> : vector<8x64xf32>
      %91 = tpu.matmul %88, %90, %cst_56 {dimension_numbers = #tpu.dot_dimension_numbers<[1], [0], [0], [1], [0, 0, 1, 1], [], []>} : vector<8x32xbf16>, vector<32x64xbf16>, vector<8x64xf32> -> vector<8x64xf32>
      %c0_57 = arith.constant 0 : index
      %c0_58 = arith.constant 0 : index
      %92 = vector.load %arg15[%c0_57, %c0_58] : memref<1x64xf32, #tpu.memory_space<vmem>>, vector<1x64xf32>
      %93 = vector.broadcast %92 : vector<1x64xf32> to vector<8x64xf32>
      %94 = arith.addf %91, %93 : vector<8x64xf32>
      %cst_59 = arith.constant 5.000000e-01 : f32
      %95 = vector.broadcast %cst_59 : f32 to vector<8x64xf32>
      %96 = arith.mulf %94, %95 : vector<8x64xf32>
      %cst_60 = arith.constant 0.707106769 : f32
      %97 = vector.broadcast %cst_60 : f32 to vector<8x64xf32>
      %98 = arith.mulf %94, %97 : vector<8x64xf32>
      %99 = math.erf %98 : vector<8x64xf32>
      %cst_61 = arith.constant 1.000000e+00 : f32
      %100 = vector.broadcast %cst_61 : f32 to vector<8x64xf32>
      %101 = arith.addf %100, %99 : vector<8x64xf32>
      %102 = arith.mulf %96, %101 : vector<8x64xf32>
      %103 = arith.truncf %102 : vector<8x64xf32> to vector<8x64xbf16>
      %c0_62 = arith.constant 0 : index
      %c0_63 = arith.constant 0 : index
      %104 = vector.load %arg16[%c0_62, %c0_63] : memref<64x32xbf16, #tpu.memory_space<vmem>>, vector<64x32xbf16>
      %cst_64 = arith.constant dense<0.000000e+00> : vector<8x32xf32>
      %105 = tpu.matmul %103, %104, %cst_64 {dimension_numbers = #tpu.dot_dimension_numbers<[1], [0], [0], [1], [0, 0, 1, 1], [], []>} : vector<8x64xbf16>, vector<64x32xbf16>, vector<8x32xf32> -> vector<8x32xf32>
      %106 = arith.addf %89, %105 : vector<8x32xf32>
      %c0_65 = arith.constant 0 : index
      %c0_66 = arith.constant 0 : index
      %107 = vector.load %arg17[%c0_65, %c0_66] : memref<1x32xf32, #tpu.memory_space<vmem>>, vector<1x32xf32>
      %108 = vector.broadcast %107 : vector<1x32xf32> to vector<8x32xf32>
      %109 = arith.addf %106, %108 : vector<8x32xf32>
      %110 = arith.addf %109, %87 : vector<8x32xf32>
      %c0_67 = arith.constant 0 : index
      %c0_68 = arith.constant 0 : index
      %111 = vector.load %arg18[%c0_67, %c0_68] : memref<1x32xf32, #tpu.memory_space<vmem>>, vector<1x32xf32>
      %c0_69 = arith.constant 0 : index
      %c0_70 = arith.constant 0 : index
      %112 = vector.load %arg19[%c0_69, %c0_70] : memref<1x32xf32, #tpu.memory_space<vmem>>, vector<1x32xf32>
      %cst_71 = arith.constant dense<0.000000e+00> : vector<8xf32>
      %113 = vector.multi_reduction <add>, %110, %cst_71 [1] : vector<8x32xf32> to vector<8xf32>
      %114 = vector.shape_cast %113 : vector<8xf32> to vector<8x1xf32>
      %cst_72 = arith.constant 3.200000e+01 : f32
      %115 = vector.broadcast %cst_72 : f32 to vector<8x1xf32>
      %116 = arith.divf %114, %115 : vector<8x1xf32>
      %117 = vector.broadcast %116 : vector<8x1xf32> to vector<8x32xf32>
      %118 = arith.subf %110, %117 : vector<8x32xf32>
      %119 = arith.mulf %118, %118 : vector<8x32xf32>
      %cst_73 = arith.constant dense<0.000000e+00> : vector<8xf32>
      %120 = vector.multi_reduction <add>, %119, %cst_73 [1] : vector<8x32xf32> to vector<8xf32>
      %121 = vector.shape_cast %120 : vector<8xf32> to vector<8x1xf32>
      %cst_74 = arith.constant 3.200000e+01 : f32
      %122 = vector.broadcast %cst_74 : f32 to vector<8x1xf32>
      %123 = arith.divf %121, %122 : vector<8x1xf32>
      %124 = vector.broadcast %116 : vector<8x1xf32> to vector<8x32xf32>
      %125 = arith.subf %110, %124 : vector<8x32xf32>
      %cst_75 = arith.constant 9.99999996E-13 : f32
      %126 = vector.broadcast %cst_75 : f32 to vector<8x1xf32>
      %127 = arith.addf %123, %126 : vector<8x1xf32>
      %128 = math.rsqrt %127 : vector<8x1xf32>
      %129 = vector.broadcast %128 : vector<8x1xf32> to vector<8x32xf32>
      %130 = arith.mulf %125, %129 : vector<8x32xf32>
      %131 = vector.broadcast %111 : vector<1x32xf32> to vector<8x32xf32>
      %132 = arith.mulf %130, %131 : vector<8x32xf32>
      %133 = vector.broadcast %112 : vector<1x32xf32> to vector<8x32xf32>
      %134 = arith.addf %132, %133 : vector<8x32xf32>
      %c0_76 = arith.constant 0 : index
      %c0_77 = arith.constant 0 : index
      %c0_78 = arith.constant 0 : index
      %135 = vector.load %arg20[%c0_76, %c0_77, %c0_78] : memref<1x8x32xf32, #tpu.memory_space<vmem>>, vector<1x8x32xf32>
      %136 = vector.shape_cast %135 : vector<1x8x32xf32> to vector<8x32xf32>
      %137 = vector.shape_cast %134 : vector<8x32xf32> to vector<1x8x32xf32>
      tpu.vector_store %arg20[%c0_76, %c0_77, %c0_78], %137 {strides = array<i32>} : memref<1x8x32xf32, #tpu.memory_space<vmem>>, vector<1x8x32xf32>,
    } else {
    }
    return
  }
  func.func @transform_0(%arg0: i32, %arg1: i32) -> (i32, i32, i32) {
    %c0_i32 = arith.constant 0 : i32
    %c0_i32_0 = arith.constant 0 : i32
    %c0_i32_1 = arith.constant 0 : i32
    return %arg0, %c0_i32, %c0_i32_0 : i32, i32, i32
  }
  func.func @transform_1(%arg0: i32, %arg1: i32) -> (i32, i32, i32) {
    %c0_i32 = arith.constant 0 : i32
    %c0_i32_0 = arith.constant 0 : i32
    %c0_i32_1 = arith.constant 0 : i32
    return %arg0, %c0_i32, %c0_i32_0 : i32, i32, i32
  }
  func.func @transform_2(%arg0: i32, %arg1: i32) -> (i32, i32, i32) {
    %c0_i32 = arith.constant 0 : i32
    %c0_i32_0 = arith.constant 0 : i32
    %c0_i32_1 = arith.constant 0 : i32
    return %arg1, %c0_i32, %c0_i32_0 : i32, i32, i32
  }
  func.func @transform_3(%arg0: i32, %arg1: i32) -> (i32, i32, i32) {
    %c0_i32 = arith.constant 0 : i32
    %c0_i32_0 = arith.constant 0 : i32
    %c0_i32_1 = arith.constant 0 : i32
    return %arg1, %c0_i32, %c0_i32_0 : i32, i32, i32
  }
  func.func @transform_4(%arg0: i32, %arg1: i32) -> (i32, i32, i32) {
    %c0_i32 = arith.constant 0 : i32
    %c0_i32_0 = arith.constant 0 : i32
    %c0_i32_1 = arith.constant 0 : i32
    return %arg1, %c0_i32, %c0_i32_0 : i32, i32, i32
  }
  func.func @transform_5(%arg0: i32, %arg1: i32) -> (i32, i32, i32) {
    %c0_i32 = arith.constant 0 : i32
    %c0_i32_0 = arith.constant 0 : i32
    %c0_i32_1 = arith.constant 0 : i32
    return %arg1, %c0_i32, %c0_i32_0 : i32, i32, i32
  }
  func.func @transform_6(%arg0: i32, %arg1: i32) -> (i32, i32, i32) {
    %c0_i32 = arith.constant 0 : i32
    %c0_i32_0 = arith.constant 0 : i32
    %c0_i32_1 = arith.constant 0 : i32
    return %arg1, %c0_i32, %c0_i32_0 : i32, i32, i32
  }
  func.func @transform_7(%arg0: i32, %arg1: i32) -> (i32, i32, i32) {
    %c0_i32 = arith.constant 0 : i32
    %c0_i32_0 = arith.constant 0 : i32
    %c0_i32_1 = arith.constant 0 : i32
    return %arg1, %c0_i32, %c0_i32_0 : i32, i32, i32
  }
  func.func @transform_8(%arg0: i32, %arg1: i32) -> (i32, i32, i32) {
    %c0_i32 = arith.constant 0 : i32
    %c0_i32_0 = arith.constant 0 : i32
    %c0_i32_1 = arith.constant 0 : i32
    return %arg1, %c0_i32, %c0_i32_0 : i32, i32, i32
  }
  func.func @transform_9(%arg0: i32, %arg1: i32) -> (i32, i32) {
    %c0_i32 = arith.constant 0 : i32
    %c0_i32_0 = arith.constant 0 : i32
    %c0_i32_1 = arith.constant 0 : i32
    return %c0_i32, %c0_i32_0 : i32, i32
  }
  func.func @transform_10(%arg0: i32, %arg1: i32) -> (i32, i32) {
    %c0_i32 = arith.constant 0 : i32
    %c0_i32_0 = arith.constant 0 : i32
    %c0_i32_1 = arith.constant 0 : i32
    return %c0_i32, %c0_i32_0 : i32, i32
  }
  func.func @transform_11(%arg0: i32, %arg1: i32) -> (i32, i32) {
    %c0_i32 = arith.constant 0 : i32
    %c0_i32_0 = arith.constant 0 : i32
    %c0_i32_1 = arith.constant 0 : i32
    return %c0_i32, %c0_i32_0 : i32, i32
  }
  func.func @transform_12(%arg0: i32, %arg1: i32) -> (i32, i32) {
    %c0_i32 = arith.constant 0 : i32
    %c0_i32_0 = arith.constant 0 : i32
    %c0_i32_1 = arith.constant 0 : i32
    return %c0_i32, %c0_i32_0 : i32, i32
  }
  func.func @transform_13(%arg0: i32, %arg1: i32) -> (i32, i32) {
    %c0_i32 = arith.constant 0 : i32
    %c0_i32_0 = arith.constant 0 : i32
    %c0_i32_1 = arith.constant 0 : i32
    return %c0_i32, %c0_i32_0 : i32, i32
  }
  func.func @transform_14(%arg0: i32, %arg1: i32) -> (i32, i32) {
    %c0_i32 = arith.constant 0 : i32
    %c0_i32_0 = arith.constant 0 : i32
    %c0_i32_1 = arith.constant 0 : i32
    return %c0_i32, %c0_i32_0 : i32, i32
  }
  func.func @transform_15(%arg0: i32, %arg1: i32) -> (i32, i32) {
    %c0_i32 = arith.constant 0 : i32
    %c0_i32_0 = arith.constant 0 : i32
    %c0_i32_1 = arith.constant 0 : i32
    return %c0_i32, %c0_i32_0 : i32, i32
  }
  func.func @transform_16(%arg0: i32, %arg1: i32) -> (i32, i32) {
    %c0_i32 = arith.constant 0 : i32
    %c0_i32_0 = arith.constant 0 : i32
    %c0_i32_1 = arith.constant 0 : i32
    return %c0_i32, %c0_i32_0 : i32, i32
  }
  func.func @transform_17(%arg0: i32, %arg1: i32) -> (i32, i32) {
    %c0_i32 = arith.constant 0 : i32
    %c0_i32_0 = arith.constant 0 : i32
    %c0_i32_1 = arith.constant 0 : i32
    return %c0_i32, %c0_i32_0 : i32, i32
  }
  func.func @transform_18(%arg0: i32, %arg1: i32) -> (i32, i32, i32) {
    %c0_i32 = arith.constant 0 : i32
    %c0_i32_0 = arith.constant 0 : i32
    %c0_i32_1 = arith.constant 0 : i32
    return %arg0, %c0_i32, %c0_i32_0 : i32, i32, i32
  }
}

</mosaic_0001>

<llo_original>
// kernel: tpu_custom_call.1
$region0: #{tpu_custom_call.1}
  #allocation0 [shape = 'u32[]', space=smem, size = 0x4, offset = 0x4, fixed_abs, tag = 'smem constant byte address 0x4 - core index']
  #allocation1 [shape = 'u32[144,128]{1,0:T(1,128)}', space=vmem, size = 0x12000, scoped, tag = 'internal scratch']
  #allocation2 [shape = 'f32[8,32]{1,0:T(8,128)}', space=vmem, size = 0x1000, scoped, tag = 'scratch operand']
  %s0 = inlined_call_operand.vmem [shape: f32[2,1,8], index: 0, kind: input, shape index: {}]
  %s1 = inlined_call_operand.vmem [shape: f32[2,8,32], index: 1, kind: input, shape index: {}]
  %s2 = inlined_call_operand.vmem [shape: bf16[4,32,8], index: 2, kind: input, shape index: {}]
  %s3 = inlined_call_operand.vmem [shape: f32[4,1,8], index: 3, kind: input, shape index: {}]
  %s4 = inlined_call_operand.vmem [shape: bf16[4,32,8], index: 4, kind: input, shape index: {}]
  %s5 = inlined_call_operand.vmem [shape: f32[4,1,8], index: 5, kind: input, shape index: {}]
  %s6 = inlined_call_operand.vmem [shape: bf16[4,32,8], index: 6, kind: input, shape index: {}]
  %s7 = inlined_call_operand.vmem [shape: f32[4,1,8], index: 7, kind: input, shape index: {}]
  %s8 = inlined_call_operand.vmem [shape: bf16[4,8,32], index: 8, kind: input, shape index: {}]
  %s9 = inlined_call_operand.vmem [shape: f32[1,32], index: 9, kind: input, shape index: {}]
  %s10 = inlined_call_operand.vmem [shape: f32[1,32], index: 10, kind: input, shape index: {}]
  %s11 = inlined_call_operand.vmem [shape: f32[1,32], index: 11, kind: input, shape index: {}]
  %s12 = inlined_call_operand.vmem [shape: bf16[32,64], index: 12, kind: input, shape index: {}]
  %s13 = inlined_call_operand.vmem [shape: f32[1,64], index: 13, kind: input, shape index: {}]
  %s14 = inlined_call_operand.vmem [shape: bf16[64,32], index: 14, kind: input, shape index: {}]
  %s15 = inlined_call_operand.vmem [shape: f32[1,32], index: 15, kind: input, shape index: {}]
  %s16 = inlined_call_operand.vmem [shape: f32[1,32], index: 16, kind: input, shape index: {}]
  %s17 = inlined_call_operand.vmem [shape: f32[1,32], index: 17, kind: input, shape index: {}]
  %s18 = inlined_call_operand.hbm [shape: f32[2,8,32], index: 18, kind: output, shape index: {}]
  %s19 = sld [smem:[#allocation0]]
  $region113: #{tpu_custom_call.1} parent=0
    _
  %s21 = ssub.s32 1, %s19
  %s22 = scalar_select 0, %s21, %s19
  $region1: #{tpu_custom_call.1} parent=0
    #allocation3 [shape = 'u8[8192]{0}', space=vmem, size = 0x2000, scoped, tag = 'output window, operand 0']
    #allocation4 [shape = 's32[2]{0}', space=sflag, size = 0x8, scoped, tag = 'scoped memory for tpu_custom_call.1']
    %23 = vsyncpa [#allocation4], 0
    %s24 = scalar_lea.sflag [#allocation4], 1
    %25 = vsyncpa %s24, 0
    loop: start=0, step=1, limit=10
    $region2: #{tpu_custom_call.1} parent=1 // loop_pre_header
      _
    $region3: #{tpu_custom_call.1} parent=1 // loop_header
      %s27 = sphi 0, %s31
      %p28 = scmp.ge.s32.totalorder %s27, 10
      %s34 = sphi 0, %s46
      %s35 = sphi 0, %s42
      %s36 = sphi 0, %s34
      %s37 = sphi 0, %s35
      %s38 = sphi 0, %s36
      %s39 = sphi 0, %s37
      %s49 = sphi 0, %s51
      %s52 = sphi 0, %s49
      %s53 = sphi 0, %s52
      %s69 = sphi 0, %s53
      %s75 = sphi 0, %s77
      %s78 = sphi 0, %s75
      %s79 = sphi 0, %s78
      %s95 = sphi 0, %s79
      %s101 = sphi 0, %s103
      %s104 = sphi 0, %s101
      %s105 = sphi 0, %s104
      %s121 = sphi 0, %s105
      %s127 = sphi 0, %s129
      %s130 = sphi 0, %s127
      %s131 = sphi 0, %s130
      %s147 = sphi 0, %s131
      %s153 = sphi 0, %s155
      %s156 = sphi 0, %s153
      %s157 = sphi 0, %s156
      %s173 = sphi 0, %s157
      %s179 = sphi 0, %s181
      %s182 = sphi 0, %s179
      %s183 = sphi 0, %s182
      %s199 = sphi 0, %s183
      %s205 = sphi 0, %s207
      %s208 = sphi 0, %s205
      %s209 = sphi 0, %s208
      %s225 = sphi 0, %s209
      %s231 = sphi 0, %s233
      %s234 = sphi 0, %s231
      %s235 = sphi 0, %s234
      %s251 = sphi 0, %s235
      %s257 = sphi 0, %s259
      %s260 = sphi 0, %s257
      %s261 = sphi 0, %s260
      %s277 = sphi 0, %s261
      %s281 = sphi 0, %s281
      %s283 = sphi 0, %s281
      %s284 = sphi 0, %s283
      %s298 = sphi 0, %s284
      %s302 = sphi 0, %s302
      %s304 = sphi 0, %s302
      %s305 = sphi 0, %s304
      %s319 = sphi 0, %s305
      %s323 = sphi 0, %s323
      %s325 = sphi 0, %s323
      %s326 = sphi 0, %s325
      %s340 = sphi 0, %s326
      %s344 = sphi 0, %s344
      %s346 = sphi 0, %s344
      %s347 = sphi 0, %s346
      %s361 = sphi 0, %s347
      %s365 = sphi 0, %s365
      %s367 = sphi 0, %s365
      %s368 = sphi 0, %s367
      %s382 = sphi 0, %s368
      %s386 = sphi 0, %s386
      %s388 = sphi 0, %s386
      %s389 = sphi 0, %s388
      %s403 = sphi 0, %s389
      %s407 = sphi 0, %s407
      %s409 = sphi 0, %s407
      %s410 = sphi 0, %s409
      %s424 = sphi 0, %s410
      %s428 = sphi 0, %s428
      %s430 = sphi 0, %s428
      %s431 = sphi 0, %s430
      %s445 = sphi 0, %s431
      %s449 = sphi 0, %s449
      %s451 = sphi 0, %s449
      %s452 = sphi 0, %s451
      %s466 = sphi 0, %s452
      %s472 = sphi 0, %s474
      %s475 = sphi 0, %s472
      %s476 = sphi 0, %s475
      %s492 = sphi 0, %s476
    $region4: #{tpu_custom_call.1} parent=1 // loop_header_branch
      %30 = sbr.rel (%p28) target = $region8
    $region5: #{tpu_custom_call.1} parent=1 // loop_body
      %s32 = ssub.s32 %s27, 1
      %s33 = ssub.s32 %s27, 2
      %s40 = sadd.s32 1, %s35
      %p41 = scmp.ge.s32.totalorder %s40, 4
      %s42 = scalar_select %p41, 0, %s40
      %s43 = sadd.s32 1, %s34
      %s44 = scalar_select %p41, %s43, %s34
      %p45 = scmp.ge.s32.totalorder %s44, 2
      %s46 = scalar_select %p45, 0, %s44
      %s47 = ssub.s32 %s34, %s46
      %p48 = scmp.eq.s32.totalorder %s47, 0
      %s50 = sadd.s32 %s49, 1
      %s51 = scalar_select %p48, %s49, %s50
      %p54 = pneg %p48
      %p55 = scmp.eq.s32.totalorder %s27, 7
      %p56 = por %p54, %p55
      %p57 = scmp.ne.s32.totalorder %s49, %s52
      %p58 = scmp.eq.s32.totalorder %s27, 0
      %p59 = por %p57, %p58
      %p60 = scmp.ne.s32.totalorder %s49, %s52
      %p61 = scmp.eq.s32.totalorder %s32, 7
      %p62 = por %p60, %p61
      %p63 = scmp.ne.s32.totalorder %s52, %s53
      %p64 = scmp.eq.s32.totalorder %s32, 0
      %p65 = por %p63, %p64
      %p66 = scmp.ne.s32.totalorder %s52, %s53
      %p67 = scmp.eq.s32.totalorder %s33, 7
      %p68 = por %p66, %p67
      %p70 = scmp.ne.s32.totalorder %s53, %s69
      %p71 = scmp.eq.s32.totalorder %s33, 0
      %p72 = por %p70, %p71
      %s73 = ssub.s32 %s34, %s46
      %p74 = scmp.eq.s32.totalorder %s73, 0
      %s76 = sadd.s32 %s75, 1
      %s77 = scalar_select %p74, %s75, %s76
      %p80 = pneg %p74
      %p81 = scmp.eq.s32.totalorder %s27, 7
      %p82 = por %p80, %p81
      %p83 = scmp.ne.s32.totalorder %s75, %s78
      %p84 = scmp.eq.s32.totalorder %s27, 0
      %p85 = por %p83, %p84
      %p86 = scmp.ne.s32.totalorder %s75, %s78
      %p87 = scmp.eq.s32.totalorder %s32, 7
      %p88 = por %p86, %p87
      %p89 = scmp.ne.s32.totalorder %s78, %s79
      %p90 = scmp.eq.s32.totalorder %s32, 0
      %p91 = por %p89, %p90
      %p92 = scmp.ne.s32.totalorder %s78, %s79
      %p93 = scmp.eq.s32.totalorder %s33, 7
      %p94 = por %p92, %p93
      %p96 = scmp.ne.s32.totalorder %s79, %s95
      %p97 = scmp.eq.s32.totalorder %s33, 0
      %p98 = por %p96, %p97
      %s99 = ssub.s32 %s35, %s42
      %p100 = scmp.eq.s32.totalorder %s99, 0
      %s102 = sadd.s32 %s101, 1
      %s103 = scalar_select %p100, %s101, %s102
      %p106 = pneg %p100
      %p107 = scmp.eq.s32.totalorder %s27, 7
      %p108 = por %p106, %p107
      %p109 = scmp.ne.s32.totalorder %s101, %s104
      %p110 = scmp.eq.s32.totalorder %s27, 0
      %p111 = por %p109, %p110
      %p112 = scmp.ne.s32.totalorder %s101, %s104
      %p113 = scmp.eq.s32.totalorder %s32, 7
      %p114 = por %p112, %p113
      %p115 = scmp.ne.s32.totalorder %s104, %s105
      %p116 = scmp.eq.s32.totalorder %s32, 0
      %p117 = por %p115, %p116
      %p118 = scmp.ne.s32.totalorder %s104, %s105
      %p119 = scmp.eq.s32.totalorder %s33, 7
      %p120 = por %p118, %p119
      %p122 = scmp.ne.s32.totalorder %s105, %s121
      %p123 = scmp.eq.s32.totalorder %s33, 0
      %p124 = por %p122, %p123
      %s125 = ssub.s32 %s35, %s42
      %p126 = scmp.eq.s32.totalorder %s125, 0
      %s128 = sadd.s32 %s127, 1
      %s129 = scalar_select %p126, %s127, %s128
      %p132 = pneg %p126
      %p133 = scmp.eq.s32.totalorder %s27, 7
      %p134 = por %p132, %p133
      %p135 = scmp.ne.s32.totalorder %s127, %s130
      %p136 = scmp.eq.s32.totalorder %s27, 0
      %p137 = por %p135, %p136
      %p138 = scmp.ne.s32.totalorder %s127, %s130
      %p139 = scmp.eq.s32.totalorder %s32, 7
      %p140 = por %p138, %p139
      %p141 = scmp.ne.s32.totalorder %s130, %s131
      %p142 = scmp.eq.s32.totalorder %s32, 0
      %p143 = por %p141, %p142
      %p144 = scmp.ne.s32.totalorder %s130, %s131
      %p145 = scmp.eq.s32.totalorder %s33, 7
      %p146 = por %p144, %p145
      %p148 = scmp.ne.s32.totalorder %s131, %s147
      %p149 = scmp.eq.s32.totalorder %s33, 0
      %p150 = por %p148, %p149
      %s151 = ssub.s32 %s35, %s42
      %p152 = scmp.eq.s32.totalorder %s151, 0
      %s154 = sadd.s32 %s153, 1
      %s155 = scalar_select %p152, %s153, %s154
      %p158 = pneg %p152
      %p159 = scmp.eq.s32.totalorder %s27, 7
      %p160 = por %p158, %p159
      %p161 = scmp.ne.s32.totalorder %s153, %s156
      %p162 = scmp.eq.s32.totalorder %s27, 0
      %p163 = por %p161, %p162
      %p164 = scmp.ne.s32.totalorder %s153, %s156
      %p165 = scmp.eq.s32.totalorder %s32, 7
      %p166 = por %p164, %p165
      %p167 = scmp.ne.s32.totalorder %s156, %s157
      %p168 = scmp.eq.s32.totalorder %s32, 0
      %p169 = por %p167, %p168
      %p170 = scmp.ne.s32.totalorder %s156, %s157
      %p171 = scmp.eq.s32.totalorder %s33, 7
      %p172 = por %p170, %p171
      %p174 = scmp.ne.s32.totalorder %s157, %s173
      %p175 = scmp.eq.s32.totalorder %s33, 0
      %p176 = por %p174, %p175
      %s177 = ssub.s32 %s35, %s42
      %p178 = scmp.eq.s32.totalorder %s177, 0
      %s180 = sadd.s32 %s179, 1
      %s181 = scalar_select %p178, %s179, %s180
      %p184 = pneg %p178
      %p185 = scmp.eq.s32.totalorder %s27, 7
      %p186 = por %p184, %p185
      %p187 = scmp.ne.s32.totalorder %s179, %s182
      %p188 = scmp.eq.s32.totalorder %s27, 0
      %p189 = por %p187, %p188
      %p190 = scmp.ne.s32.totalorder %s179, %s182
      %p191 = scmp.eq.s32.totalorder %s32, 7
      %p192 = por %p190, %p191
      %p193 = scmp.ne.s32.totalorder %s182, %s183
      %p194 = scmp.eq.s32.totalorder %s32, 0
      %p195 = por %p193, %p194
      %p196 = scmp.ne.s32.totalorder %s182, %s183
      %p197 = scmp.eq.s32.totalorder %s33, 7
      %p198 = por %p196, %p197
      %p200 = scmp.ne.s32.totalorder %s183, %s199
      %p201 = scmp.eq.s32.totalorder %s33, 0
      %p202 = por %p200, %p201
      %s203 = ssub.s32 %s35, %s42
      %p204 = scmp.eq.s32.totalorder %s203, 0
      %s206 = sadd.s32 %s205, 1
      %s207 = scalar_select %p204, %s205, %s206
      %p210 = pneg %p204
      %p211 = scmp.eq.s32.totalorder %s27, 7
      %p212 = por %p210, %p211
      %p213 = scmp.ne.s32.totalorder %s205, %s208
      %p214 = scmp.eq.s32.totalorder %s27, 0
      %p215 = por %p213, %p214
      %p216 = scmp.ne.s32.totalorder %s205, %s208
      %p217 = scmp.eq.s32.totalorder %s32, 7
      %p218 = por %p216, %p217
      %p219 = scmp.ne.s32.totalorder %s208, %s209
      %p220 = scmp.eq.s32.totalorder %s32, 0
      %p221 = por %p219, %p220
      %p222 = scmp.ne.s32.totalorder %s208, %s209
      %p223 = scmp.eq.s32.totalorder %s33, 7
      %p224 = por %p222, %p223
      %p226 = scmp.ne.s32.totalorder %s209, %s225
      %p227 = scmp.eq.s32.totalorder %s33, 0
      %p228 = por %p226, %p227
      %s229 = ssub.s32 %s35, %s42
      %p230 = scmp.eq.s32.totalorder %s229, 0
      %s232 = sadd.s32 %s231, 1
      %s233 = scalar_select %p230, %s231, %s232
      %p236 = pneg %p230
      %p237 = scmp.eq.s32.totalorder %s27, 7
      %p238 = por %p236, %p237
      %p239 = scmp.ne.s32.totalorder %s231, %s234
      %p240 = scmp.eq.s32.totalorder %s27, 0
      %p241 = por %p239, %p240
      %p242 = scmp.ne.s32.totalorder %s231, %s234
      %p243 = scmp.eq.s32.totalorder %s32, 7
      %p244 = por %p242, %p243
      %p245 = scmp.ne.s32.totalorder %s234, %s235
      %p246 = scmp.eq.s32.totalorder %s32, 0
      %p247 = por %p245, %p246
      %p248 = scmp.ne.s32.totalorder %s234, %s235
      %p249 = scmp.eq.s32.totalorder %s33, 7
      %p250 = por %p248, %p249
      %p252 = scmp.ne.s32.totalorder %s235, %s251
      %p253 = scmp.eq.s32.totalorder %s33, 0
      %p254 = por %p252, %p253
      %s255 = ssub.s32 %s35, %s42
      %p256 = scmp.eq.s32.totalorder %s255, 0
      %s258 = sadd.s32 %s257, 1
      %s259 = scalar_select %p256, %s257, %s258
      %p262 = pneg %p256
      %p263 = scmp.eq.s32.totalorder %s27, 7
      %p264 = por %p262, %p263
      %p265 = scmp.ne.s32.totalorder %s257, %s260
      %p266 = scmp.eq.s32.totalorder %s27, 0
      %p267 = por %p265, %p266
      %p268 = scmp.ne.s32.totalorder %s257, %s260
      %p269 = scmp.eq.s32.totalorder %s32, 7
      %p270 = por %p268, %p269
      %p271 = scmp.ne.s32.totalorder %s260, %s261
      %p272 = scmp.eq.s32.totalorder %s32, 0
      %p273 = por %p271, %p272
      %p274 = scmp.ne.s32.totalorder %s260, %s261
      %p275 = scmp.eq.s32.totalorder %s33, 7
      %p276 = por %p274, %p275
      %p278 = scmp.ne.s32.totalorder %s261, %s277
      %p279 = scmp.eq.s32.totalorder %s33, 0
      %p280 = por %p278, %p279
      %s282 = sadd.s32 %s281, 1
      %p285 = scmp.eq.s32.totalorder %s27, 7
      %p286 = scmp.ne.s32.totalorder %s281, %s283
      %p287 = scmp.eq.s32.totalorder %s27, 0
      %p288 = por %p286, %p287
      %p289 = scmp.ne.s32.totalorder %s281, %s283
      %p290 = scmp.eq.s32.totalorder %s32, 7
      %p291 = por %p289, %p290
      %p292 = scmp.ne.s32.totalorder %s283, %s284
      %p293 = scmp.eq.s32.totalorder %s32, 0
      %p294 = por %p292, %p293
      %p295 = scmp.ne.s32.totalorder %s283, %s284
      %p296 = scmp.eq.s32.totalorder %s33, 7
      %p297 = por %p295, %p296
      %p299 = scmp.ne.s32.totalorder %s284, %s298
      %p300 = scmp.eq.s32.totalorder %s33, 0
      %p301 = por %p299, %p300
      %s303 = sadd.s32 %s302, 1
      %p306 = scmp.eq.s32.totalorder %s27, 7
      %p307 = scmp.ne.s32.totalorder %s302, %s304
      %p308 = scmp.eq.s32.totalorder %s27, 0
      %p309 = por %p307, %p308
      %p310 = scmp.ne.s32.totalorder %s302, %s304
      %p311 = scmp.eq.s32.totalorder %s32, 7
      %p312 = por %p310, %p311
      %p313 = scmp.ne.s32.totalorder %s304, %s305
      %p314 = scmp.eq.s32.totalorder %s32, 0
      %p315 = por %p313, %p314
      %p316 = scmp.ne.s32.totalorder %s304, %s305
      %p317 = scmp.eq.s32.totalorder %s33, 7
      %p318 = por %p316, %p317
      %p320 = scmp.ne.s32.totalorder %s305, %s319
      %p321 = scmp.eq.s32.totalorder %s33, 0
      %p322 = por %p320, %p321
      %s324 = sadd.s32 %s323, 1
      %p327 = scmp.eq.s32.totalorder %s27, 7
      %p328 = scmp.ne.s32.totalorder %s323, %s325
      %p329 = scmp.eq.s32.totalorder %s27, 0
      %p330 = por %p328, %p329
      %p331 = scmp.ne.s32.totalorder %s323, %s325
      %p332 = scmp.eq.s32.totalorder %s32, 7
      %p333 = por %p331, %p332
      %p334 = scmp.ne.s32.totalorder %s325, %s326
      %p335 = scmp.eq.s32.totalorder %s32, 0
      %p336 = por %p334, %p335
      %p337 = scmp.ne.s32.totalorder %s325, %s326
      %p338 = scmp.eq.s32.totalorder %s33, 7
      %p339 = por %p337, %p338
      %p341 = scmp.ne.s32.totalorder %s326, %s340
      %p342 = scmp.eq.s32.totalorder %s33, 0
      %p343 = por %p341, %p342
      %s345 = sadd.s32 %s344, 1
      %p348 = scmp.eq.s32.totalorder %s27, 7
      %p349 = scmp.ne.s32.totalorder %s344, %s346
      %p350 = scmp.eq.s32.totalorder %s27, 0
      %p351 = por %p349, %p350
      %p352 = scmp.ne.s32.totalorder %s344, %s346
      %p353 = scmp.eq.s32.totalorder %s32, 7
      %p354 = por %p352, %p353
      %p355 = scmp.ne.s32.totalorder %s346, %s347
      %p356 = scmp.eq.s32.totalorder %s32, 0
      %p357 = por %p355, %p356
      %p358 = scmp.ne.s32.totalorder %s346, %s347
      %p359 = scmp.eq.s32.totalorder %s33, 7
      %p360 = por %p358, %p359
      %p362 = scmp.ne.s32.totalorder %s347, %s361
      %p363 = scmp.eq.s32.totalorder %s33, 0
      %p364 = por %p362, %p363
      %s366 = sadd.s32 %s365, 1
      %p369 = scmp.eq.s32.totalorder %s27, 7
      %p370 = scmp.ne.s32.totalorder %s365, %s367
      %p371 = scmp.eq.s32.totalorder %s27, 0
      %p372 = por %p370, %p371
      %p373 = scmp.ne.s32.totalorder %s365, %s367
      %p374 = scmp.eq.s32.totalorder %s32, 7
      %p375 = por %p373, %p374
      %p376 = scmp.ne.s32.totalorder %s367, %s368
      %p377 = scmp.eq.s32.totalorder %s32, 0
      %p378 = por %p376, %p377
      %p379 = scmp.ne.s32.totalorder %s367, %s368
      %p380 = scmp.eq.s32.totalorder %s33, 7
      %p381 = por %p379, %p380
      %p383 = scmp.ne.s32.totalorder %s368, %s382
      %p384 = scmp.eq.s32.totalorder %s33, 0
      %p385 = por %p383, %p384
      %s387 = sadd.s32 %s386, 1
      %p390 = scmp.eq.s32.totalorder %s27, 7
      %p391 = scmp.ne.s32.totalorder %s386, %s388
      %p392 = scmp.eq.s32.totalorder %s27, 0
      %p393 = por %p391, %p392
      %p394 = scmp.ne.s32.totalorder %s386, %s388
      %p395 = scmp.eq.s32.totalorder %s32, 7
      %p396 = por %p394, %p395
      %p397 = scmp.ne.s32.totalorder %s388, %s389
      %p398 = scmp.eq.s32.totalorder %s32, 0
      %p399 = por %p397, %p398
      %p400 = scmp.ne.s32.totalorder %s388, %s389
      %p401 = scmp.eq.s32.totalorder %s33, 7
      %p402 = por %p400, %p401
      %p404 = scmp.ne.s32.totalorder %s389, %s403
      %p405 = scmp.eq.s32.totalorder %s33, 0
      %p406 = por %p404, %p405
      %s408 = sadd.s32 %s407, 1
      %p411 = scmp.eq.s32.totalorder %s27, 7
      %p412 = scmp.ne.s32.totalorder %s407, %s409
      %p413 = scmp.eq.s32.totalorder %s27, 0
      %p414 = por %p412, %p413
      %p415 = scmp.ne.s32.totalorder %s407, %s409
      %p416 = scmp.eq.s32.totalorder %s32, 7
      %p417 = por %p415, %p416
      %p418 = scmp.ne.s32.totalorder %s409, %s410
      %p419 = scmp.eq.s32.totalorder %s32, 0
      %p420 = por %p418, %p419
      %p421 = scmp.ne.s32.totalorder %s409, %s410
      %p422 = scmp.eq.s32.totalorder %s33, 7
      %p423 = por %p421, %p422
      %p425 = scmp.ne.s32.totalorder %s410, %s424
      %p426 = scmp.eq.s32.totalorder %s33, 0
      %p427 = por %p425, %p426
      %s429 = sadd.s32 %s428, 1
      %p432 = scmp.eq.s32.totalorder %s27, 7
      %p433 = scmp.ne.s32.totalorder %s428, %s430
      %p434 = scmp.eq.s32.totalorder %s27, 0
      %p435 = por %p433, %p434
      %p436 = scmp.ne.s32.totalorder %s428, %s430
      %p437 = scmp.eq.s32.totalorder %s32, 7
      %p438 = por %p436, %p437
      %p439 = scmp.ne.s32.totalorder %s430, %s431
      %p440 = scmp.eq.s32.totalorder %s32, 0
      %p441 = por %p439, %p440
      %p442 = scmp.ne.s32.totalorder %s430, %s431
      %p443 = scmp.eq.s32.totalorder %s33, 7
      %p444 = por %p442, %p443
      %p446 = scmp.ne.s32.totalorder %s431, %s445
      %p447 = scmp.eq.s32.totalorder %s33, 0
      %p448 = por %p446, %p447
      %s450 = sadd.s32 %s449, 1
      %p453 = scmp.eq.s32.totalorder %s27, 7
      %p454 = scmp.ne.s32.totalorder %s449, %s451
      %p455 = scmp.eq.s32.totalorder %s27, 0
      %p456 = por %p454, %p455
      %p457 = scmp.ne.s32.totalorder %s449, %s451
      %p458 = scmp.eq.s32.totalorder %s32, 7
      %p459 = por %p457, %p458
      %p460 = scmp.ne.s32.totalorder %s451, %s452
      %p461 = scmp.eq.s32.totalorder %s32, 0
      %p462 = por %p460, %p461
      %p463 = scmp.ne.s32.totalorder %s451, %s452
      %p464 = scmp.eq.s32.totalorder %s33, 7
      %p465 = por %p463, %p464
      %p467 = scmp.ne.s32.totalorder %s452, %s466
      %p468 = scmp.eq.s32.totalorder %s33, 0
      %p469 = por %p467, %p468
      %s470 = ssub.s32 %s34, %s46
      %p471 = scmp.eq.s32.totalorder %s470, 0
      %s473 = sadd.s32 %s472, 1
      %s474 = scalar_select %p471, %s472, %s473
      %p477 = pneg %p471
      %p478 = scmp.eq.s32.totalorder %s27, 7
      %p479 = por %p477, %p478
      %p480 = scmp.ne.s32.totalorder %s472, %s475
      %p481 = scmp.eq.s32.totalorder %s27, 0
      %p482 = por %p480, %p481
      %p483 = scmp.ne.s32.totalorder %s472, %s475
      %p484 = scmp.eq.s32.totalorder %s32, 7
      %p485 = por %p483, %p484
      %p486 = scmp.ne.s32.totalorder %s475, %s476
      %p487 = scmp.eq.s32.totalorder %s32, 0
      %p488 = por %p486, %p487
      %p489 = scmp.ne.s32.totalorder %s475, %s476
      %p490 = scmp.eq.s32.totalorder %s33, 7
      %p491 = por %p489, %p490
      %p493 = scmp.ne.s32.totalorder %s476, %s492
      %p494 = scmp.eq.s32.totalorder %s33, 0
      %p495 = por %p493, %p494
      %p496 = scmp.le.s32.totalorder 1, %s27
      %p497 = scmp.lt.s32.totalorder %s27, 9
      %p498 = pnand %p496, %p497
      %p499 = pneg %p498
      // Predicated region
      $region9: #{tpu_custom_call.1} parent=5 // pred_check
        _
      $region10: #{tpu_custom_call.1} parent=5 // pred_check_branch
        %501 = sbr.rel (%p498) target = $region12
      $region11: #{tpu_custom_call.1} parent=5 // pred_region
        %s502 = ssub.s32 %s27, 1
        // Predicated region
        $region13: #{tpu_custom_call.1} parent=11 // pred_check
          %p503 = pneg %p294
        $region14: #{tpu_custom_call.1} parent=11 // pred_check_branch
          %505 = sbr.rel (%p503) target = $region16
        $region15: #{tpu_custom_call.1} parent=11 // pred_region
          _
        $region16: #{tpu_custom_call.1} parent=11 // pred_fallthru
          _
        // Predicated region
        $region17: #{tpu_custom_call.1} parent=11 // pred_check
          %p506 = pneg %p315
        $region18: #{tpu_custom_call.1} parent=11 // pred_check_branch
          %508 = sbr.rel (%p506) target = $region20
        $region19: #{tpu_custom_call.1} parent=11 // pred_region
          _
        $region20: #{tpu_custom_call.1} parent=11 // pred_fallthru
          _
        // Predicated region
        $region21: #{tpu_custom_call.1} parent=11 // pred_check
          %p509 = pneg %p336
        $region22: #{tpu_custom_call.1} parent=11 // pred_check_branch
          %511 = sbr.rel (%p509) target = $region24
        $region23: #{tpu_custom_call.1} parent=11 // pred_region
          _
        $region24: #{tpu_custom_call.1} parent=11 // pred_fallthru
          _
        // Predicated region
        $region25: #{tpu_custom_call.1} parent=11 // pred_check
          %p512 = pneg %p357
        $region26: #{tpu_custom_call.1} parent=11 // pred_check_branch
          %514 = sbr.rel (%p512) target = $region28
        $region27: #{tpu_custom_call.1} parent=11 // pred_region
          _
        $region28: #{tpu_custom_call.1} parent=11 // pred_fallthru
          _
        // Predicated region
        $region29: #{tpu_custom_call.1} parent=11 // pred_check
          %p515 = pneg %p378
        $region30: #{tpu_custom_call.1} parent=11 // pred_check_branch
          %517 = sbr.rel (%p515) target = $region32
        $region31: #{tpu_custom_call.1} parent=11 // pred_region
          _
        $region32: #{tpu_custom_call.1} parent=11 // pred_fallthru
          _
        // Predicated region
        $region33: #{tpu_custom_call.1} parent=11 // pred_check
          %p518 = pneg %p399
        $region34: #{tpu_custom_call.1} parent=11 // pred_check_branch
          %520 = sbr.rel (%p518) target = $region36
        $region35: #{tpu_custom_call.1} parent=11 // pred_region
          _
        $region36: #{tpu_custom_call.1} parent=11 // pred_fallthru
          _
        // Predicated region
        $region37: #{tpu_custom_call.1} parent=11 // pred_check
          %p521 = pneg %p420
        $region38: #{tpu_custom_call.1} parent=11 // pred_check_branch
          %523 = sbr.rel (%p521) target = $region40
        $region39: #{tpu_custom_call.1} parent=11 // pred_region
          _
        $region40: #{tpu_custom_call.1} parent=11 // pred_fallthru
          _
        // Predicated region
        $region41: #{tpu_custom_call.1} parent=11 // pred_check
          %p524 = pneg %p441
        $region42: #{tpu_custom_call.1} parent=11 // pred_check_branch
          %526 = sbr.rel (%p524) target = $region44
        $region43: #{tpu_custom_call.1} parent=11 // pred_region
          _
        $region44: #{tpu_custom_call.1} parent=11 // pred_fallthru
          _
        // Predicated region
        $region45: #{tpu_custom_call.1} parent=11 // pred_check
          %p527 = pneg %p462
        $region46: #{tpu_custom_call.1} parent=11 // pred_check_branch
          %529 = sbr.rel (%p527) target = $region48
        $region47: #{tpu_custom_call.1} parent=11 // pred_region
          _
        $region48: #{tpu_custom_call.1} parent=11 // pred_fallthru
          _
      $region12: #{tpu_custom_call.1} parent=5 // pred_fallthru
        _
      %p530 = scmp.lt.s32.totalorder %s27, 8
      // Predicated region
      $region49: #{tpu_custom_call.1} parent=5 // pred_check
        %p531 = pneg %p530
      $region50: #{tpu_custom_call.1} parent=5 // pred_check_branch
        %533 = sbr.rel (%p531) target = $region52
      $region51: #{tpu_custom_call.1} parent=5 // pred_region
        // Predicated region
        $region53: #{tpu_custom_call.1} parent=51 // pred_check
          %p534 = pneg %p59
        $region54: #{tpu_custom_call.1} parent=51 // pred_check_branch
          %536 = sbr.rel (%p534) target = $region56
        $region55: #{tpu_custom_call.1} parent=51 // pred_region
          %p537 = scmp.lt.s32.totalorder %s34, 1
          %s538 = scalar_select %p537, %s34, 1
          %s539 = scalar_lea.vmem %s0, %s538
        $region56: #{tpu_custom_call.1} parent=51 // pred_fallthru
          _
        // Predicated region
        $region57: #{tpu_custom_call.1} parent=51 // pred_check
          %p540 = pneg %p85
        $region58: #{tpu_custom_call.1} parent=51 // pred_check_branch
          %542 = sbr.rel (%p540) target = $region60
        $region59: #{tpu_custom_call.1} parent=51 // pred_region
          %p543 = scmp.lt.s32.totalorder %s34, 1
          %s544 = scalar_select %p543, %s34, 1
          %s545 = smul.addr %s544, 8
          %s546 = scalar_lea.vmem %s1, %s545
        $region60: #{tpu_custom_call.1} parent=51 // pred_fallthru
          _
        // Predicated region
        $region61: #{tpu_custom_call.1} parent=51 // pred_check
          %p547 = pneg %p111
        $region62: #{tpu_custom_call.1} parent=51 // pred_check_branch
          %549 = sbr.rel (%p547) target = $region64
        $region63: #{tpu_custom_call.1} parent=51 // pred_region
          %p550 = scmp.lt.s32.totalorder %s35, 3
          %s551 = scalar_select %p550, %s35, 3
          %s552 = smul.addr %s551, 4
          %s553 = smul.addr %s552, 4
          %s554 = scalar_lea.vmem %s2, %s553
        $region64: #{tpu_custom_call.1} parent=51 // pred_fallthru
          _
        // Predicated region
        $region65: #{tpu_custom_call.1} parent=51 // pred_check
          %p555 = pneg %p137
        $region66: #{tpu_custom_call.1} parent=51 // pred_check_branch
          %557 = sbr.rel (%p555) target = $region68
        $region67: #{tpu_custom_call.1} parent=51 // pred_region
          %p558 = scmp.lt.s32.totalorder %s35, 3
          %s559 = scalar_select %p558, %s35, 3
          %s560 = scalar_lea.vmem %s3, %s559
        $region68: #{tpu_custom_call.1} parent=51 // pred_fallthru
          _
        // Predicated region
        $region69: #{tpu_custom_call.1} parent=51 // pred_check
          %p561 = pneg %p163
        $region70: #{tpu_custom_call.1} parent=51 // pred_check_branch
          %563 = sbr.rel (%p561) target = $region72
        $region71: #{tpu_custom_call.1} parent=51 // pred_region
          %p564 = scmp.lt.s32.totalorder %s35, 3
          %s565 = scalar_select %p564, %s35, 3
          %s566 = smul.addr %s565, 4
          %s567 = smul.addr %s566, 4
          %s568 = scalar_lea.vmem %s4, %s567
        $region72: #{tpu_custom_call.1} parent=51 // pred_fallthru
          _
        // Predicated region
        $region73: #{tpu_custom_call.1} parent=51 // pred_check
          %p569 = pneg %p189
        $region74: #{tpu_custom_call.1} parent=51 // pred_check_branch
          %571 = sbr.rel (%p569) target = $region76
        $region75: #{tpu_custom_call.1} parent=51 // pred_region
          %p572 = scmp.lt.s32.totalorder %s35, 3
          %s573 = scalar_select %p572, %s35, 3
          %s574 = scalar_lea.vmem %s5, %s573
        $region76: #{tpu_custom_call.1} parent=51 // pred_fallthru
          _
        // Predicated region
        $region77: #{tpu_custom_call.1} parent=51 // pred_check
          %p575 = pneg %p215
        $region78: #{tpu_custom_call.1} parent=51 // pred_check_branch
          %577 = sbr.rel (%p575) target = $region80
        $region79: #{tpu_custom_call.1} parent=51 // pred_region
          %p578 = scmp.lt.s32.totalorder %s35, 3
          %s579 = scalar_select %p578, %s35, 3
          %s580 = smul.addr %s579, 4
          %s581 = smul.addr %s580, 4
          %s582 = scalar_lea.vmem %s6, %s581
        $region80: #{tpu_custom_call.1} parent=51 // pred_fallthru
          _
        // Predicated region
        $region81: #{tpu_custom_call.1} parent=51 // pred_check
          %p583 = pneg %p241
        $region82: #{tpu_custom_call.1} parent=51 // pred_check_branch
          %585 = sbr.rel (%p583) target = $region84
        $region83: #{tpu_custom_call.1} parent=51 // pred_region
          %p586 = scmp.lt.s32.totalorder %s35, 3
          %s587 = scalar_select %p586, %s35, 3
          %s588 = scalar_lea.vmem %s7, %s587
        $region84: #{tpu_custom_call.1} parent=51 // pred_fallthru
          _
        // Predicated region
        $region85: #{tpu_custom_call.1} parent=51 // pred_check
          %p589 = pneg %p267
        $region86: #{tpu_custom_call.1} parent=51 // pred_check_branch
          %591 = sbr.rel (%p589) target = $region88
        $region87: #{tpu_custom_call.1} parent=51 // pred_region
          %p592 = scmp.lt.s32.totalorder %s35, 3
          %s593 = scalar_select %p592, %s35, 3
          %s594 = smul.addr %s593, 4
          %s595 = scalar_lea.vmem %s8, %s594
        $region88: #{tpu_custom_call.1} parent=51 // pred_fallthru
          _
      $region52: #{tpu_custom_call.1} parent=5 // pred_fallthru
        _
      %p596 = scmp.le.s32.totalorder 1, %s27
      %p597 = scmp.lt.s32.totalorder %s27, 9
      %p598 = pnand %p596, %p597
      %p599 = pneg %p598
      // Predicated region
      $region89: #{tpu_custom_call.1} parent=5 // pred_check
        _
      $region90: #{tpu_custom_call.1} parent=5 // pred_check_branch
        %601 = sbr.rel (%p598) target = $region92
      $region91: #{tpu_custom_call.1} parent=5 // pred_region
        %s602 = ssub.s32 %s27, 1
        %p603 = scmp.lt.s32.totalorder %s36, 1
        %s604 = scalar_select %p603, %s36, 1
        %s605 = scalar_lea.vmem %s0, %s604
        %p606 = pneg %p65
        %p607 = pneg %p62
        %p608 = scmp.lt.s32.totalorder %s36, 1
        %s609 = scalar_select %p608, %s36, 1
        %s610 = smul.addr %s609, 8
        %s611 = scalar_lea.vmem %s1, %s610
        %p612 = pneg %p91
        %p613 = pneg %p88
        %p614 = scmp.lt.s32.totalorder %s37, 3
        %s615 = scalar_select %p614, %s37, 3
        %s616 = smul.addr %s615, 4
        %s617 = smul.addr %s616, 4
        %s618 = scalar_lea.vmem %s2, %s617
        %p619 = pneg %p117
        %p620 = pneg %p114
        %p621 = scmp.lt.s32.totalorder %s37, 3
        %s622 = scalar_select %p621, %s37, 3
        %s623 = scalar_lea.vmem %s3, %s622
        %p624 = pneg %p143
        %p625 = pneg %p140
        %p626 = scmp.lt.s32.totalorder %s37, 3
        %s627 = scalar_select %p626, %s37, 3
        %s628 = smul.addr %s627, 4
        %s629 = smul.addr %s628, 4
        %s630 = scalar_lea.vmem %s4, %s629
        %p631 = pneg %p169
        %p632 = pneg %p166
        %p633 = scmp.lt.s32.totalorder %s37, 3
        %s634 = scalar_select %p633, %s37, 3
        %s635 = scalar_lea.vmem %s5, %s634
        %p636 = pneg %p195
        %p637 = pneg %p192
        %p638 = scmp.lt.s32.totalorder %s37, 3
        %s639 = scalar_select %p638, %s37, 3
        %s640 = smul.addr %s639, 4
        %s641 = smul.addr %s640, 4
        %s642 = scalar_lea.vmem %s6, %s641
        %p643 = pneg %p221
        %p644 = pneg %p218
        %p645 = scmp.lt.s32.totalorder %s37, 3
        %s646 = scalar_select %p645, %s37, 3
        %s647 = scalar_lea.vmem %s7, %s646
        %p648 = pneg %p247
        %p649 = pneg %p244
        %p650 = scmp.lt.s32.totalorder %s37, 3
        %s651 = scalar_select %p650, %s37, 3
        %s652 = smul.addr %s651, 4
        %s653 = scalar_lea.vmem %s8, %s652
        %p654 = pneg %p273
        %p655 = pneg %p270
        %p656 = pneg %p294
        %p657 = pneg %p291
        %p658 = pneg %p315
        %p659 = pneg %p312
        %p660 = pneg %p336
        %p661 = pneg %p333
        %p662 = pneg %p357
        %p663 = pneg %p354
        %p664 = pneg %p378
        %p665 = pneg %p375
        %p666 = pneg %p399
        %p667 = pneg %p396
        %p668 = pneg %p420
        %p669 = pneg %p417
        %p670 = pneg %p441
        %p671 = pneg %p438
        %p672 = pneg %p462
        %p673 = pneg %p459
        %p674 = pneg %p488
        %p675 = pneg %p485
        %s676 = sand.u32 %s475, 1
        %s677 = scalar_lea.sflag [#allocation4], %s676
        %s678 = sand.u32 %s475, 1
        %s679 = smul.addr %s678, 8
        %s680 = scalar_lea.vmem [#allocation3], %s679
        %p681 = scmp.lt.s32.totalorder %s36, 1
        %s682 = scalar_select %p681, %s36, 1
        %s683 = scalar_lea.vmem %s0, %s682
        %p684 = scmp.lt.s32.totalorder %s36, 1
        %s685 = scalar_select %p684, %s36, 1
        %s686 = smul.addr %s685, 8
        %s687 = scalar_lea.vmem %s1, %s686
        %p688 = scmp.lt.s32.totalorder %s37, 3
        %s689 = scalar_select %p688, %s37, 3
        %s690 = smul.addr %s689, 4
        %s691 = smul.addr %s690, 4
        %s692 = scalar_lea.vmem %s2, %s691
        %p693 = scmp.lt.s32.totalorder %s37, 3
        %s694 = scalar_select %p693, %s37, 3
        %s695 = scalar_lea.vmem %s3, %s694
        %p696 = scmp.lt.s32.totalorder %s37, 3
        %s697 = scalar_select %p696, %s37, 3
        %s698 = smul.addr %s697, 4
        %s699 = smul.addr %s698, 4
        %s700 = scalar_lea.vmem %s4, %s699
        %p701 = scmp.lt.s32.totalorder %s37, 3
        %s702 = scalar_select %p701, %s37, 3
        %s703 = scalar_lea.vmem %s5, %s702
        %p704 = scmp.lt.s32.totalorder %s37, 3
        %s705 = scalar_select %p704, %s37, 3
        %s706 = smul.addr %s705, 4
        %s707 = smul.addr %s706, 4
        %s708 = scalar_lea.vmem %s6, %s707
        %p709 = scmp.lt.s32.totalorder %s37, 3
        %s710 = scalar_select %p709, %s37, 3
        %s711 = scalar_lea.vmem %s7, %s710
        %p712 = scmp.lt.s32.totalorder %s37, 3
        %s713 = scalar_select %p712, %s37, 3
        %s714 = smul.addr %s713, 4
        %s715 = scalar_lea.vmem %s8, %s714
        %p717 = scmp.eq.s32.totalorder %s37, 0
        // Predicated region
        $region93: #{tpu_custom_call.1} parent=91 // pred_check
          %p718 = pneg %p717
        $region94: #{tpu_custom_call.1} parent=91 // pred_check_branch
          %720 = sbr.rel (%p718) target = $region96
        $region95: #{tpu_custom_call.1} parent=91 // pred_region
          %vm721 = vcmask 261120
          %722 = vst.msk [vmem:[#allocation2] sm:$0xff] %vm721, 0.0
        $region96: #{tpu_custom_call.1} parent=91 // pred_fallthru
          _
        %v723 = vld [vmem:[%s687] sm:$0xff]
        %v724 = vpack.c.bf16 %v723, %v723
        %v725 = vld [vmem:[%s683] sm:$0x1]
        %v726 = vld [vmem:[%s692] sm:$0xf]
        %v727 = vld [vmem:[%s692 + $0x4] sm:$0xf]
        %v728 = vld [vmem:[%s692 + $0x8] sm:$0xf]
        %v729 = vld [vmem:[%s692 + $0xc] sm:$0xf]
        %v730 = vld [vmem:[%s700] sm:$0xf]
        %v731 = vld [vmem:[%s700 + $0x4] sm:$0xf]
        %v732 = vld [vmem:[%s700 + $0x8] sm:$0xf]
        %v733 = vld [vmem:[%s700 + $0xc] sm:$0xf]
        %v734 = vld [vmem:[%s708] sm:$0xf]
        %v735 = vld [vmem:[%s708 + $0x4] sm:$0xf]
        %v736 = vld [vmem:[%s708 + $0x8] sm:$0xf]
        %v737 = vld [vmem:[%s708 + $0xc] sm:$0xf]
        %v738 = vld [vmem:[%s715] sm:$0xf]
        %v739 = vld [vmem:[%s695] sm:$0x1]
        %v740 = vld [vmem:[%s703] sm:$0x1]
        %v741 = vld [vmem:[%s711] sm:$0x1]
        %v743 = vlaneseq
        %v744 = vshrl.u32 %v743, 7
        %v745 = vsub.s32 0, %v744
        %v746 = vrot.slane %v740, %v745
        %v752 = vunpack.c.l.b16 %v730
        %v753 = vunpack.c.l.b16 %v731
        %v754 = vunpack.c.l.b16 %v732
        %v755 = vunpack.c.l.b16 %v733
        %v756 = vpack.c.b16 %v753, %v752
        %v757 = vpack.c.b16 %v755, %v754
        %vm760 = vcmask 261120
        %v762 = vsel %vm760, %v724, 0
        %764 = vmatprep.subr.bf16.mxu0 0
        %765 = vmatpush1.bf16.msra.mxu0 %v756
        %766 = vmatprep.subr.bf16.mxu0 0
        %767 = vmatpush1.bf16.msra.mxu0 %v757
        %768 = vmatprep.subr.bf16.mxu0 0
        %769 = vmatpush1.bf16.msra.mxu0 0
        %770 = vmatprep.subr.bf16.mxu0 0
        %771 = vmatpush1.bf16.msra.mxu0 0
        %772 = vmatprep.subr.bf16.mxu0 0
        %773 = vmatpush1.bf16.msra.mxu0 0
        %774 = vmatprep.subr.bf16.mxu0 0
        %775 = vmatpush1.bf16.msra.mxu0 0
        %776 = vmatprep.subr.bf16.mxu0 0
        %777 = vmatpush1.bf16.msra.mxu0 0
        %778 = vmatprep.subr.bf16.mxu0 0
        %779 = vmatpush1.bf16.msra.mxu0 0
        %780 = vmatprep.subr.bf16.mxu0 0
        %781 = vmatpush1.bf16.msra.mxu0 0
        %782 = vmatprep.subr.bf16.mxu0 0
        %783 = vmatpush1.bf16.msra.mxu0 0
        %784 = vmatprep.subr.bf16.mxu0 0
        %785 = vmatpush1.bf16.msra.mxu0 0
        %786 = vmatprep.subr.bf16.mxu0 0
        %787 = vmatpush1.bf16.msra.mxu0 0
        %788 = vmatprep.subr.bf16.mxu0 0
        %789 = vmatpush1.bf16.msra.mxu0 0
        %790 = vmatprep.subr.bf16.mxu0 0
        %791 = vmatpush1.bf16.msra.mxu0 0
        %792 = vmatprep.subr.bf16.mxu0 0
        %793 = vmatpush1.bf16.msra.mxu0 0
        %794 = vmatprep.subr.bf16.mxu0 0
        %795 = vmatpush1.bf16.msra.mxu0 0
        %796 = vmatprep.mubr.bf16.mxu0 0
        %797 = vmatmul.mubr.bf16.gmra.mrb[0].mxu0 %v762
        %v798 = vpop.f32.mrb[0].mxu0
        %v799 = vadd.f32 %v746, %v798
        %v800 = vpop.f32.mrb[0].mxu0
        %v801 = vpop.f32.mrb[0].mxu0
        %v802 = vpop.f32.mrb[0].mxu0
        %803 = vdwg.mxu0
        %v804 = vpack.c.bf16 %v799, %v799
        %v806 = vlaneseq
        %v807 = vshrl.u32 %v806, 7
        %v808 = vsub.s32 0, %v807
        %v809 = vrot.slane %v741, %v808
        %v815 = vunpack.c.l.b16 %v734
        %v816 = vunpack.c.l.b16 %v735
        %v817 = vunpack.c.l.b16 %v736
        %v818 = vunpack.c.l.b16 %v737
        %v819 = vpack.c.b16 %v816, %v815
        %v820 = vpack.c.b16 %v818, %v817
        %823 = vmatprep.subr.bf16.mxu0 0
        %824 = vmatpush1.bf16.msra.mxu0 %v819
        %825 = vmatprep.subr.bf16.mxu0 0
        %826 = vmatpush1.bf16.msra.mxu0 %v820
        %827 = vmatprep.subr.bf16.mxu0 0
        %828 = vmatpush1.bf16.msra.mxu0 0
        %829 = vmatprep.subr.bf16.mxu0 0
        %830 = vmatpush1.bf16.msra.mxu0 0
        %831 = vmatprep.subr.bf16.mxu0 0
        %832 = vmatpush1.bf16.msra.mxu0 0
        %833 = vmatprep.subr.bf16.mxu0 0
        %834 = vmatpush1.bf16.msra.mxu0 0
        %835 = vmatprep.subr.bf16.mxu0 0
        %836 = vmatpush1.bf16.msra.mxu0 0
        %837 = vmatprep.subr.bf16.mxu0 0
        %838 = vmatpush1.bf16.msra.mxu0 0
        %839 = vmatprep.subr.bf16.mxu0 0
        %840 = vmatpush1.bf16.msra.mxu0 0
        %841 = vmatprep.subr.bf16.mxu0 0
        %842 = vmatpush1.bf16.msra.mxu0 0
        %843 = vmatprep.subr.bf16.mxu0 0
        %844 = vmatpush1.bf16.msra.mxu0 0
        %845 = vmatprep.subr.bf16.mxu0 0
        %846 = vmatpush1.bf16.msra.mxu0 0
        %847 = vmatprep.subr.bf16.mxu0 0
        %848 = vmatpush1.bf16.msra.mxu0 0
        %849 = vmatprep.subr.bf16.mxu0 0
        %850 = vmatpush1.bf16.msra.mxu0 0
        %851 = vmatprep.subr.bf16.mxu0 0
        %852 = vmatpush1.bf16.msra.mxu0 0
        %853 = vmatprep.subr.bf16.mxu0 0
        %854 = vmatpush1.bf16.msra.mxu0 0
        %855 = vmatprep.mubr.bf16.mxu0 0
        %856 = vmatmul.mubr.bf16.gmra.mrb[0].mxu0 %v762
        %v857 = vpop.f32.mrb[0].mxu0
        %v858 = vadd.f32 %v809, %v857
        %v859 = vpop.f32.mrb[0].mxu0
        %v860 = vpop.f32.mrb[0].mxu0
        %v861 = vpop.f32.mrb[0].mxu0
        %862 = vdwg.mxu0
        %v863 = vpack.c.bf16 %v858, %v858
        %v865 = vlaneseq
        %v866 = vshrl.u32 %v865, 7
        %v867 = vsub.s32 0, %v866
        %v868 = vrot.slane %v739, %v867
        %v874 = vunpack.c.l.b16 %v726
        %v875 = vunpack.c.l.b16 %v727
        %v876 = vunpack.c.l.b16 %v728
        %v877 = vunpack.c.l.b16 %v729
        %v878 = vpack.c.b16 %v875, %v874
        %v879 = vpack.c.b16 %v877, %v876
        %882 = vmatprep.subr.bf16.mxu0 0
        %883 = vmatpush1.bf16.msra.mxu0 %v878
        %884 = vmatprep.subr.bf16.mxu0 0
        %885 = vmatpush1.bf16.msra.mxu0 %v879
        %886 = vmatprep.subr.bf16.mxu0 0
        %887 = vmatpush1.bf16.msra.mxu0 0
        %888 = vmatprep.subr.bf16.mxu0 0
        %889 = vmatpush1.bf16.msra.mxu0 0
        %890 = vmatprep.subr.bf16.mxu0 0
        %891 = vmatpush1.bf16.msra.mxu0 0
        %892 = vmatprep.subr.bf16.mxu0 0
        %893 = vmatpush1.bf16.msra.mxu0 0
        %894 = vmatprep.subr.bf16.mxu0 0
        %895 = vmatpush1.bf16.msra.mxu0 0
        %896 = vmatprep.subr.bf16.mxu0 0
        %897 = vmatpush1.bf16.msra.mxu0 0
        %898 = vmatprep.subr.bf16.mxu0 0
        %899 = vmatpush1.bf16.msra.mxu0 0
        %900 = vmatprep.subr.bf16.mxu0 0
        %901 = vmatpush1.bf16.msra.mxu0 0
        %902 = vmatprep.subr.bf16.mxu0 0
        %903 = vmatpush1.bf16.msra.mxu0 0
        %904 = vmatprep.subr.bf16.mxu0 0
        %905 = vmatpush1.bf16.msra.mxu0 0
        %906 = vmatprep.subr.bf16.mxu0 0
        %907 = vmatpush1.bf16.msra.mxu0 0
        %908 = vmatprep.subr.bf16.mxu0 0
        %909 = vmatpush1.bf16.msra.mxu0 0
        %910 = vmatprep.subr.bf16.mxu0 0
        %911 = vmatpush1.bf16.msra.mxu0 0
        %912 = vmatprep.subr.bf16.mxu0 0
        %913 = vmatpush1.bf16.msra.mxu0 0
        %914 = vmatprep.mubr.bf16.mxu0 0
        %915 = vmatmul.mubr.bf16.gmra.mrb[0].mxu0 %v762
        %v916 = vpop.f32.mrb[0].mxu0
        %v917 = vadd.f32 %v868, %v916
        %v918 = vpop.f32.mrb[0].mxu0
        %v919 = vpop.f32.mrb[0].mxu0
        %v920 = vpop.f32.mrb[0].mxu0
        %921 = vdwg.mxu0
        %v922 = vmul.f32 %v917, 0.35355338
        %v923 = vpack.c.bf16 %v922, %v922
        %v925 = vlaneseq
        %v926 = vshrl.u32 %v925, 7
        %v927 = vsub.s32 0, %v926
        %v928 = vrot.slane %v725, %v927
        %vm930 = vcmask 64512
        %v932 = vsel %vm930, %v923, 0
        %v935 = vsel %vm930, %v804, 0
        %937 = vmatprep.subr.bf16.mxu0 0
        %938 = vmatpush1.bf16.xpose.msra.mxu0 %v935
        %939 = vmatprep.subr.bf16.mxu0 0
        %940 = vmatpush1.bf16.xpose.msra.mxu0 0
        %941 = vmatprep.subr.bf16.mxu0 0
        %942 = vmatpush1.bf16.xpose.msra.mxu0 0
        %943 = vmatprep.subr.bf16.mxu0 0
        %944 = vmatpush1.bf16.xpose.msra.mxu0 0
        %945 = vmatprep.subr.bf16.mxu0 0
        %946 = vmatpush1.bf16.xpose.msra.mxu0 0
        %947 = vmatprep.subr.bf16.mxu0 0
        %948 = vmatpush1.bf16.xpose.msra.mxu0 0
        %949 = vmatprep.subr.bf16.mxu0 0
        %950 = vmatpush1.bf16.xpose.msra.mxu0 0
        %951 = vmatprep.subr.bf16.mxu0 0
        %952 = vmatpush1.bf16.xpose.msra.mxu0 0
        %953 = vmatprep.subr.bf16.mxu0 0
        %954 = vmatpush1.bf16.xpose.msra.mxu0 0
        %955 = vmatprep.subr.bf16.mxu0 0
        %956 = vmatpush1.bf16.xpose.msra.mxu0 0
        %957 = vmatprep.subr.bf16.mxu0 0
        %958 = vmatpush1.bf16.xpose.msra.mxu0 0
        %959 = vmatprep.subr.bf16.mxu0 0
        %960 = vmatpush1.bf16.xpose.msra.mxu0 0
        %961 = vmatprep.subr.bf16.mxu0 0
        %962 = vmatpush1.bf16.xpose.msra.mxu0 0
        %963 = vmatprep.subr.bf16.mxu0 0
        %964 = vmatpush1.bf16.xpose.msra.mxu0 0
        %965 = vmatprep.subr.bf16.mxu0 0
        %966 = vmatpush1.bf16.xpose.msra.mxu0 0
        %967 = vmatprep.subr.bf16.mxu0 0
        %968 = vmatpush1.bf16.xpose.msra.mxu0 0
        %969 = vmatprep.mubr.bf16.mxu0 0
        %970 = vmatmul.mubr.bf16.gmra.mrb[0].mxu0 %v932
        %v971 = vpop.f32.mrb[0].mxu0
        %v972 = vadd.f32 %v928, %v971
        %v973 = vpop.f32.mrb[0].mxu0
        %v974 = vpop.f32.mrb[0].mxu0
        %v975 = vpop.f32.mrb[0].mxu0
        %976 = vdwg.mxu0
        %v977 = vsel %vm930, %v972, -inf
        %978 = vmax.xlane.f32.xlu0 %v977
        %v979 = vpop.xlane.xlu0 %978
        %v980 = vsub.f32 %v972, %v979
        %v981 = vmul.f32 %v980, 1.442695
        %v982 = vpow.pop %v981
        %v983 = vsel %vm930, %v982, 0.0
        %984 = vadd.xlane.f32.xlu0 %v983
        %v985 = vpop.xlane.xlu0 %984
        %v986 = vrcp.pop %v985
        %v987 = vmul.f32 %v982, %v986
        %v988 = vpack.c.bf16 %v987, %v987
        %v990 = vsel %vm930, %v988, 0
        %vm992 = vcmask 1043456
        %v994 = vsel %vm992, %v863, 0
        %996 = vmatprep.subr.bf16.mxu0 0
        %997 = vmatpush1.bf16.msra.mxu0 %v994
        %998 = vmatprep.subr.bf16.mxu0 0
        %999 = vmatpush1.bf16.msra.mxu0 0
        %1000 = vmatprep.subr.bf16.mxu0 0
        %1001 = vmatpush1.bf16.msra.mxu0 0
        %1002 = vmatprep.subr.bf16.mxu0 0
        %1003 = vmatpush1.bf16.msra.mxu0 0
        %1004 = vmatprep.subr.bf16.mxu0 0
        %1005 = vmatpush1.bf16.msra.mxu0 0
        %1006 = vmatprep.subr.bf16.mxu0 0
        %1007 = vmatpush1.bf16.msra.mxu0 0
        %1008 = vmatprep.subr.bf16.mxu0 0
        %1009 = vmatpush1.bf16.msra.mxu0 0
        %1010 = vmatprep.subr.bf16.mxu0 0
        %1011 = vmatpush1.bf16.msra.mxu0 0
        %1012 = vmatprep.subr.bf16.mxu0 0
        %1013 = vmatpush1.bf16.msra.mxu0 0
        %1014 = vmatprep.subr.bf16.mxu0 0
        %1015 = vmatpush1.bf16.msra.mxu0 0
        %1016 = vmatprep.subr.bf16.mxu0 0
        %1017 = vmatpush1.bf16.msra.mxu0 0
        %1018 = vmatprep.subr.bf16.mxu0 0
        %1019 = vmatpush1.bf16.msra.mxu0 0
        %1020 = vmatprep.subr.bf16.mxu0 0
        %1021 = vmatpush1.bf16.msra.mxu0 0
        %1022 = vmatprep.subr.bf16.mxu0 0
        %1023 = vmatpush1.bf16.msra.mxu0 0
        %1024 = vmatprep.subr.bf16.mxu0 0
        %1025 = vmatpush1.bf16.msra.mxu0 0
        %1026 = vmatprep.subr.bf16.mxu0 0
        %1027 = vmatpush1.bf16.msra.mxu0 0
        %1028 = vmatprep.mubr.bf16.mxu0 0
        %1029 = vmatmul.mubr.bf16.gmra.mrb[0].mxu0 %v990
        %v1030 = vpop.f32.mrb[0].mxu0
        %v1031 = vadd.f32 0.0, %v1030
        %v1032 = vpop.f32.mrb[0].mxu0
        %v1033 = vpop.f32.mrb[0].mxu0
        %v1034 = vpop.f32.mrb[0].mxu0
        %1035 = vdwg.mxu0
        %v1036 = vld [vmem:[#allocation2] sm:$0xff]
        %v1037 = vpack.c.bf16 %v1031, %v1031
        %v1039 = vsel %vm930, %v1037, 0
        %v1042 = vsel %vm992, %v738, 0
        %1044 = vmatprep.subr.bf16.mxu0 0
        %1045 = vmatpush1.bf16.msra.mxu0 %v1042
        %1046 = vmatprep.subr.bf16.mxu0 0
        %1047 = vmatpush1.bf16.msra.mxu0 0
        %1048 = vmatprep.subr.bf16.mxu0 0
        %1049 = vmatpush1.bf16.msra.mxu0 0
        %1050 = vmatprep.subr.bf16.mxu0 0
        %1051 = vmatpush1.bf16.msra.mxu0 0
        %1052 = vmatprep.subr.bf16.mxu0 0
        %1053 = vmatpush1.bf16.msra.mxu0 0
        %1054 = vmatprep.subr.bf16.mxu0 0
        %1055 = vmatpush1.bf16.msra.mxu0 0
        %1056 = vmatprep.subr.bf16.mxu0 0
        %1057 = vmatpush1.bf16.msra.mxu0 0
        %1058 = vmatprep.subr.bf16.mxu0 0
        %1059 = vmatpush1.bf16.msra.mxu0 0
        %1060 = vmatprep.subr.bf16.mxu0 0
        %1061 = vmatpush1.bf16.msra.mxu0 0
        %1062 = vmatprep.subr.bf16.mxu0 0
        %1063 = vmatpush1.bf16.msra.mxu0 0
        %1064 = vmatprep.subr.bf16.mxu0 0
        %1065 = vmatpush1.bf16.msra.mxu0 0
        %1066 = vmatprep.subr.bf16.mxu0 0
        %1067 = vmatpush1.bf16.msra.mxu0 0
        %1068 = vmatprep.subr.bf16.mxu0 0
        %1069 = vmatpush1.bf16.msra.mxu0 0
        %1070 = vmatprep.subr.bf16.mxu0 0
        %1071 = vmatpush1.bf16.msra.mxu0 0
        %1072 = vmatprep.subr.bf16.mxu0 0
        %1073 = vmatpush1.bf16.msra.mxu0 0
        %1074 = vmatprep.subr.bf16.mxu0 0
        %1075 = vmatpush1.bf16.msra.mxu0 0
        %1076 = vmatprep.mubr.bf16.mxu0 0
        %1077 = vmatmul.mubr.bf16.gmra.mrb[0].mxu0 %v1039
        %v1078 = vpop.f32.mrb[0].mxu0
        %v1079 = vadd.f32 0.0, %v1078
        %v1080 = vpop.f32.mrb[0].mxu0
        %v1081 = vpop.f32.mrb[0].mxu0
        %v1082 = vpop.f32.mrb[0].mxu0
        %1083 = vdwg.mxu0
        %v1084 = vadd.f32 %v1036, %v1079
        %1085 = vst.msk [vmem:[#allocation2] sm:$0xff] %vm760, %v1084
        %p1086 = scmp.eq.s32.totalorder %s37, 3
        // Predicated region
        $region97: #{tpu_custom_call.1} parent=91 // pred_check
          %p1087 = pneg %p1086
        $region98: #{tpu_custom_call.1} parent=91 // pred_check_branch
          %1089 = sbr.rel (%p1087) target = $region100
        $region99: #{tpu_custom_call.1} parent=91 // pred_region
          %v1090 = vld [vmem:[#allocation2] sm:$0xff]
          %v1091 = vld [vmem:[%s9] sm:$0x1]
          %v1093 = vlaneseq
          %v1094 = vshrl.u32 %v1093, 7
          %v1095 = vsub.s32 0, %v1094
          %v1096 = vrot.slane %v1091, %v1095
          %v1098 = vadd.f32 %v1090, %v1096
          %v1099 = vadd.f32 %v1098, %v723
          %v1100 = vld [vmem:[%s10] sm:$0x1]
          %v1101 = vld [vmem:[%s11] sm:$0x1]
          %v1102 = vsel %vm760, %v1099, 0.0
          %1103 = vadd.xlane.f32.xlu0 %v1102
          %v1104 = vpop.xlane.xlu0 %1103
          %v1105 = vrcp.pop 32.0
          %v1106 = vmul.f32 %v1104, %v1105
          %v1107 = vsub.f32 %v1099, %v1106
          %v1108 = vmul.f32 %v1107, %v1107
          %v1109 = vsel %vm760, %v1108, 0.0
          %1110 = vadd.xlane.f32.xlu0 %v1109
          %v1111 = vpop.xlane.xlu0 %1110
          %v1112 = vmul.f32 %v1111, %v1105
          %v1113 = vadd.f32 %v1112, 1e-12
          %v1114 = vrsqrt.pop %v1113
          %v1115 = vmul.f32 %v1107, %v1114
          %v1117 = vlaneseq
          %v1118 = vshrl.u32 %v1117, 7
          %v1119 = vsub.s32 0, %v1118
          %v1120 = vrot.slane %v1100, %v1119
          %v1122 = vmul.f32 %v1115, %v1120
          %v1124 = vlaneseq
          %v1125 = vshrl.u32 %v1124, 7
          %v1126 = vsub.s32 0, %v1125
          %v1127 = vrot.slane %v1101, %v1126
          %v1129 = vadd.f32 %v1122, %v1127
          %v1130 = vpack.c.bf16 %v1129, %v1129
          %v1131 = vld [vmem:[%s12] sm:$0xf]
          %v1132 = vld [vmem:[%s12 + $0x4] sm:$0xf]
          %v1133 = vld [vmem:[%s12 + $0x8] sm:$0xf]
          %v1134 = vld [vmem:[%s12 + $0xc] sm:$0xf]
          %v1135 = vld [vmem:[%s13] sm:$0x1]
          %v1137 = vlaneseq
          %v1138 = vshrl.u32 %v1137, 7
          %v1139 = vsub.s32 0, %v1138
          %v1140 = vrot.slane %v1135, %v1139
          %v1146 = vunpack.c.l.b16 %v1131
          %v1147 = vunpack.c.l.b16 %v1132
          %v1148 = vunpack.c.l.b16 %v1133
          %v1149 = vunpack.c.l.b16 %v1134
          %v1150 = vpack.c.b16 %v1147, %v1146
          %v1151 = vpack.c.b16 %v1149, %v1148
          %v1155 = vsel %vm760, %v1130, 0
          %1157 = vmatprep.subr.bf16.mxu0 0
          %1158 = vmatpush1.bf16.msra.mxu0 %v1150
          %1159 = vmatprep.subr.bf16.mxu0 0
          %1160 = vmatpush1.bf16.msra.mxu0 %v1151
          %1161 = vmatprep.subr.bf16.mxu0 0
          %1162 = vmatpush1.bf16.msra.mxu0 0
          %1163 = vmatprep.subr.bf16.mxu0 0
          %1164 = vmatpush1.bf16.msra.mxu0 0
          %1165 = vmatprep.subr.bf16.mxu0 0
          %1166 = vmatpush1.bf16.msra.mxu0 0
          %1167 = vmatprep.subr.bf16.mxu0 0
          %1168 = vmatpush1.bf16.msra.mxu0 0
          %1169 = vmatprep.subr.bf16.mxu0 0
          %1170 = vmatpush1.bf16.msra.mxu0 0
          %1171 = vmatprep.subr.bf16.mxu0 0
          %1172 = vmatpush1.bf16.msra.mxu0 0
          %1173 = vmatprep.subr.bf16.mxu0 0
          %1174 = vmatpush1.bf16.msra.mxu0 0
          %1175 = vmatprep.subr.bf16.mxu0 0
          %1176 = vmatpush1.bf16.msra.mxu0 0
          %1177 = vmatprep.subr.bf16.mxu0 0
          %1178 = vmatpush1.bf16.msra.mxu0 0
          %1179 = vmatprep.subr.bf16.mxu0 0
          %1180 = vmatpush1.bf16.msra.mxu0 0
          %1181 = vmatprep.subr.bf16.mxu0 0
          %1182 = vmatpush1.bf16.msra.mxu0 0
          %1183 = vmatprep.subr.bf16.mxu0 0
          %1184 = vmatpush1.bf16.msra.mxu0 0
          %1185 = vmatprep.subr.bf16.mxu0 0
          %1186 = vmatpush1.bf16.msra.mxu0 0
          %1187 = vmatprep.subr.bf16.mxu0 0
          %1188 = vmatpush1.bf16.msra.mxu0 0
          %1189 = vmatprep.mubr.bf16.mxu0 0
          %1190 = vmatmul.mubr.bf16.gmra.mrb[0].mxu0 %v1155
          %v1191 = vpop.f32.mrb[0].mxu0
          %v1192 = vadd.f32 %v1140, %v1191
          %v1193 = vpop.f32.mrb[0].mxu0
          %v1194 = vpop.f32.mrb[0].mxu0
          %v1195 = vpop.f32.mrb[0].mxu0
          %1196 = vdwg.mxu0
          %v1197 = vmul.f32 %v1192, 0.5
          %v1198 = vmul.f32 %v1192, 0.70710677
          %v1199 = verf.f32.pop %v1198
          %v1200 = vadd.f32 %v1199, 1.0
          %v1201 = vmul.f32 %v1197, %v1200
          %v1202 = vpack.c.bf16 %v1201, %v1201
          %v1203 = vld [vmem:[%s14] sm:$0xf]
          %v1204 = vld [vmem:[%s14 + $0x4] sm:$0xf]
          %v1205 = vld [vmem:[%s14 + $0x8] sm:$0xf]
          %v1206 = vld [vmem:[%s14 + $0xc] sm:$0xf]
          %v1207 = vld [vmem:[%s14 + $0x10] sm:$0xf]
          %v1208 = vld [vmem:[%s14 + $0x14] sm:$0xf]
          %v1209 = vld [vmem:[%s14 + $0x18] sm:$0xf]
          %v1210 = vld [vmem:[%s14 + $0x1c] sm:$0xf]
          %v1211 = vld [vmem:[%s15] sm:$0x1]
          %v1213 = vlaneseq
          %v1214 = vshrl.u32 %v1213, 7
          %v1215 = vsub.s32 0, %v1214
          %v1216 = vrot.slane %v1211, %v1215
          %v1226 = vunpack.c.l.b16 %v1203
          %v1227 = vunpack.c.l.b16 %v1204
          %v1228 = vunpack.c.l.b16 %v1205
          %v1229 = vunpack.c.l.b16 %v1206
          %v1230 = vunpack.c.l.b16 %v1207
          %v1231 = vunpack.c.l.b16 %v1208
          %v1232 = vunpack.c.l.b16 %v1209
          %v1233 = vunpack.c.l.b16 %v1210
          %v1234 = vpack.c.b16 %v1227, %v1226
          %v1235 = vpack.c.b16 %v1229, %v1228
          %v1236 = vpack.c.b16 %v1231, %v1230
          %v1237 = vpack.c.b16 %v1233, %v1232
          %vm1242 = vcmask 523264
          %v1244 = vsel %vm1242, %v1202, 0
          %1246 = vmatprep.subr.bf16.mxu0 0
          %1247 = vmatpush1.bf16.msra.mxu0 %v1234
          %1248 = vmatprep.subr.bf16.mxu0 0
          %1249 = vmatpush1.bf16.msra.mxu0 %v1235
          %1250 = vmatprep.subr.bf16.mxu0 0
          %1251 = vmatpush1.bf16.msra.mxu0 %v1236
          %1252 = vmatprep.subr.bf16.mxu0 0
          %1253 = vmatpush1.bf16.msra.mxu0 %v1237
          %1254 = vmatprep.subr.bf16.mxu0 0
          %1255 = vmatpush1.bf16.msra.mxu0 0
          %1256 = vmatprep.subr.bf16.mxu0 0
          %1257 = vmatpush1.bf16.msra.mxu0 0
          %1258 = vmatprep.subr.bf16.mxu0 0
          %1259 = vmatpush1.bf16.msra.mxu0 0
          %1260 = vmatprep.subr.bf16.mxu0 0
          %1261 = vmatpush1.bf16.msra.mxu0 0
          %1262 = vmatprep.subr.bf16.mxu0 0
          %1263 = vmatpush1.bf16.msra.mxu0 0
          %1264 = vmatprep.subr.bf16.mxu0 0
          %1265 = vmatpush1.bf16.msra.mxu0 0
          %1266 = vmatprep.subr.bf16.mxu0 0
          %1267 = vmatpush1.bf16.msra.mxu0 0
          %1268 = vmatprep.subr.bf16.mxu0 0
          %1269 = vmatpush1.bf16.msra.mxu0 0
          %1270 = vmatprep.subr.bf16.mxu0 0
          %1271 = vmatpush1.bf16.msra.mxu0 0
          %1272 = vmatprep.subr.bf16.mxu0 0
          %1273 = vmatpush1.bf16.msra.mxu0 0
          %1274 = vmatprep.subr.bf16.mxu0 0
          %1275 = vmatpush1.bf16.msra.mxu0 0
          %1276 = vmatprep.subr.bf16.mxu0 0
          %1277 = vmatpush1.bf16.msra.mxu0 0
          %1278 = vmatprep.mubr.bf16.mxu0 0
          %1279 = vmatmul.mubr.bf16.gmra.mrb[0].mxu0 %v1244
          %v1280 = vpop.f32.mrb[0].mxu0
          %v1281 = vadd.f32 %v1216, %v1280
          %v1282 = vpop.f32.mrb[0].mxu0
          %v1283 = vpop.f32.mrb[0].mxu0
          %v1284 = vpop.f32.mrb[0].mxu0
          %1285 = vdwg.mxu0
          %v1286 = vadd.f32 %v1281, %v1129
          %v1287 = vld [vmem:[%s16] sm:$0x1]
          %v1288 = vld [vmem:[%s17] sm:$0x1]
          %v1289 = vsel %vm760, %v1286, 0.0
          %1290 = vadd.xlane.f32.xlu0 %v1289
          %v1291 = vpop.xlane.xlu0 %1290
          %v1292 = vmul.f32 %v1291, %v1105
          %v1293 = vsub.f32 %v1286, %v1292
          %v1294 = vmul.f32 %v1293, %v1293
          %v1295 = vsel %vm760, %v1294, 0.0
          %1296 = vadd.xlane.f32.xlu0 %v1295
          %v1297 = vpop.xlane.xlu0 %1296
          %v1298 = vmul.f32 %v1297, %v1105
          %v1299 = vadd.f32 %v1298, 1e-12
          %v1300 = vrsqrt.pop %v1299
          %v1301 = vmul.f32 %v1293, %v1300
          %v1303 = vlaneseq
          %v1304 = vshrl.u32 %v1303, 7
          %v1305 = vsub.s32 0, %v1304
          %v1306 = vrot.slane %v1287, %v1305
          %v1308 = vmul.f32 %v1301, %v1306
          %v1310 = vlaneseq
          %v1311 = vshrl.u32 %v1310, 7
          %v1312 = vsub.s32 0, %v1311
          %v1313 = vrot.slane %v1288, %v1312
          %v1315 = vadd.f32 %v1308, %v1313
          %1316 = vst.msk [vmem:[%s680] sm:$0xff] %vm760, %v1315
        $region100: #{tpu_custom_call.1} parent=91 // pred_fallthru
          _
        %s1317 = sand.u32 %s475, 1
        %s1318 = scalar_lea.sflag [#allocation4], %s1317
        %s1319 = sand.u32 %s475, 1
        %s1320 = smul.addr %s1319, 8
        %s1321 = scalar_lea.vmem [#allocation3], %s1320
        // Predicated region
        $region101: #{tpu_custom_call.1} parent=91 // pred_check
          %p1322 = pneg %p485
        $region102: #{tpu_custom_call.1} parent=91 // pred_check_branch
          %1324 = sbr.rel (%p1322) target = $region104
        $region103: #{tpu_custom_call.1} parent=91 // pred_region
          %s1326 = ssub.s32 128, 128
          %1327 = vsyncadd %s1318, %s1326
          %s1328 = smul.addr %s36, 128
          %s1329 = scalar_lea.hbm %s18, %s1328
          %s1331 = sshll.u32 %s1321, 4
          %s1332 = int_to_ptr.vmem [resolvable:$true] %s1331
          %1334 = dma.vmem_to_hbm [thread:$0]  %s1332, 128, %s1329, %s1318
        $region104: #{tpu_custom_call.1} parent=91 // pred_fallthru
          _
      $region92: #{tpu_custom_call.1} parent=5 // pred_fallthru
        _
      %p1335 = scmp.le.s32.totalorder 2, %s27
      // Predicated region
      $region105: #{tpu_custom_call.1} parent=5 // pred_check
        %p1336 = pneg %p1335
      $region106: #{tpu_custom_call.1} parent=5 // pred_check_branch
        %1338 = sbr.rel (%p1336) target = $region108
      $region107: #{tpu_custom_call.1} parent=5 // pred_region
        %s1339 = ssub.s32 %s27, 2
        // Predicated region
        $region109: #{tpu_custom_call.1} parent=107 // pred_check
          %p1340 = pneg %p491
        $region110: #{tpu_custom_call.1} parent=107 // pred_check_branch
          %1342 = sbr.rel (%p1340) target = $region112
        $region111: #{tpu_custom_call.1} parent=107 // pred_region
          %s1343 = sand.u32 %s476, 1
          %s1344 = scalar_lea.sflag [#allocation4], %s1343
          %s1345 = sand.u32 %s476, 1
          %s1346 = smul.addr %s1345, 8
          %s1347 = scalar_lea.vmem [#allocation3], %s1346
          %1348 = dma.done %s1344, 128
        $region112: #{tpu_custom_call.1} parent=107 // pred_fallthru
          _
      $region108: #{tpu_custom_call.1} parent=5 // pred_fallthru
        _
    $region6: #{tpu_custom_call.1} parent=1 // loop_footer
      %s31 = sadd.s32 1, %s27
    $region7: #{tpu_custom_call.1} parent=1 // loop_footer_branch
      %26 = sbr.rel target = $region3
    $region8: #{tpu_custom_call.1} parent=1 // loop_exit
      _
    %1349 = vsyncpa [#allocation4], 1
    %s1350 = scalar_lea.sflag [#allocation4], 1
    %1351 = vsyncpa %s1350, 1

</llo_original>
